<compile_context>
chip_gen: v5e
topology: v5e:2x2
jax: 0.10.0
libtpu: 0.0.40
codegen_flags: <defaults>
</compile_context>

<pallas_src>
import jax
import jax.numpy as jnp
from jax import lax
from jax.experimental import pallas as pl
from jax.experimental.pallas import tpu as pltpu

LAYER_NORM_EPS = 1e-12  # BERT default config.layer_norm_eps


def _round_up(x, m):
    return ((x + m - 1) // m) * m


def _make_kernel(chunk_rows, n_chunks, n_sem):
    C = chunk_rows

    def kernel(ids_ref, emb_hbm, gamma_ref, beta_ref, out_ref, buf, sems):
        # ids_ref   : SMEM (N_pad,) int32      scalar-prefetched token ids
        # emb_hbm   : HBM  (V, H)              raw ref, manual per-row DMA gather
        # gamma_ref : VMEM (1, H) f32          resident (constant index_map)
        # beta_ref  : VMEM (1, H) f32          resident
        # out_ref   : VMEM (T, H) out_dtype    dense output tile
        # buf       : VMEM (T, H) table dtype  gather landing slab
        # sems      : DMA semaphores (n_sem,)  one slot per in-flight chunk
        i = pl.program_id(0)
        T, H = buf.shape
        base = pl.multiple_of(i * T, T)
        inv_h = 1.0 / float(H)

        # Hoisted affine params (loop-invariant).
        g = gamma_ref[...]
        b = beta_ref[...]

        def issue(c):
            # Issue C row copies for chunk c.  All land on semaphore slot c % n_sem.
            slot = c & (n_sem - 1)
            row0 = c * C
            for t in range(C):
                r = ids_ref[base + row0 + t]
                pltpu.make_async_copy(emb_hbm.at[r], buf.at[row0 + t],
                                      sems.at[slot]).start()

        def wait(c):
            # Aggregate wait: the DMA semaphore counts bytes, so one descriptor sized
            # to the whole (C, H) chunk waits for exactly the C row copies issued on
            # this slot.  Correct only because every copy of the chunk uses this slot
            # and nothing touches these buf rows before this wait completes.
            slot = c & (n_sem - 1)
            row0 = pl.multiple_of(c * C, C)
            pltpu.make_async_copy(emb_hbm.at[pl.ds(0, C)],
                                  buf.at[pl.ds(row0, C)],
                                  sems.at[slot]).wait()

        def layernorm(c):
            row0 = pl.multiple_of(c * C, C)
            x = buf[pl.ds(row0, C), :].astype(jnp.float32)            # (C, H)
            s = jnp.sum(x, axis=-1, keepdims=True)
            ss = jnp.sum(x * x, axis=-1, keepdims=True)
            mu = s * inv_h
            var = jnp.maximum(ss * inv_h - mu * mu, 0.0)              # biased (torch LN)
            inv = lax.rsqrt(var + LAYER_NORM_EPS)
            out_ref[pl.ds(row0, C), :] = ((x - mu) * inv * g + b).astype(out_ref.dtype)

        # Prime the pipeline, then: prefetch chunk c+1 while normalizing chunk c.
        issue(0)

        @pl.loop(0, n_chunks)
        def _(c):
            @pl.when(c + 1 < n_chunks)
            def _():
                issue(c + 1)
            wait(c)
            layernorm(c)

    return kernel


def bert_embeddings_no_position(input_ids, word_embeddings, gamma, beta, *,
                                block_tokens=1024, chunk_rows=32,
                                out_dtype=jnp.float32):
    """input_ids: (B, S) int; word_embeddings: (V, H); gamma/beta: (H,) or (1, H).

    Returns (B, S, H) out_dtype: LayerNorm(word_embeddings[input_ids]).
    """
    B, S = input_ids.shape
    V, H = word_embeddings.shape
    N = B * S

    # Tokens per grid step: multiple of 8 (sublane-dense), capped at the padded total.
    T = _round_up(min(block_tokens, _round_up(N, 8)), 8)
    # Chunk size for the intra-tile gather/compute pipeline: multiple of 8, divides T.
    C = min(_round_up(chunk_rows, 8), T)
    while T % C != 0:
        C -= 8
    n_chunks = T // C
    n_sem = 2                      # double-buffered chunks -> <= 2*C rows in flight

    N_pad = _round_up(N, T)
    num_tiles = N_pad // T

    gamma2d = jnp.asarray(gamma).reshape(1, H).astype(jnp.float32)
    beta2d = jnp.asarray(beta).reshape(1, H).astype(jnp.float32)

    # Clamp ids (no OOB DMA for untrusted inputs) and pad to a whole number of tiles.
    ids = jnp.clip(input_ids.reshape(-1).astype(jnp.int32), 0, V - 1)
    ids = jnp.pad(ids, (0, N_pad - N))

    emb_bytes = int(jnp.dtype(word_embeddings.dtype).itemsize)
    out_bytes = int(jnp.dtype(out_dtype).itemsize)
    cost = pl.CostEstimate(
        flops=10 * N_pad * H,                       # mean/var/affine, rough
        transcendentals=N_pad,                      # one rsqrt per token
        bytes_accessed=N_pad * H * emb_bytes        # gather read
                       + N_pad * H * out_bytes      # output write
                       + N_pad * 4 + 2 * H * 4,     # ids + gamma/beta
    )

    kernel = _make_kernel(C, n_chunks, n_sem)

    out = pl.pallas_call(
        kernel,
        out_shape=jax.ShapeDtypeStruct((N_pad, H), out_dtype),
        grid_spec=pltpu.PrefetchScalarGridSpec(
            num_scalar_prefetch=1,                  # ids -> SMEM, visible to index_maps
            grid=(num_tiles,),
            in_specs=[
                pl.BlockSpec(memory_space=pl.ANY),            # embedding table (HBM)
                pl.BlockSpec((1, H), lambda i, ids: (0, 0)),  # gamma (resident)
                pl.BlockSpec((1, H), lambda i, ids: (0, 0)),  # beta  (resident)
            ],
            out_specs=pl.BlockSpec((T, H), lambda i, ids: (i, 0)),
            scratch_shapes=[
                pltpu.VMEM((T, H), word_embeddings.dtype),    # gather slab
                pltpu.SemaphoreType.DMA((n_sem,)),            # per-chunk sem ring
            ],
        ),
        compiler_params=pltpu.CompilerParams(
            dimension_semantics=("parallel",)),     # tiles independent (v7x: 2 TCs)
        cost_estimate=cost,
    )(ids, word_embeddings, gamma2d, beta2d)

    return out[:N].reshape(B, S, H)


def _reference(input_ids, word_embeddings, gamma, beta):
    x = jnp.take(word_embeddings, input_ids, axis=0).astype(jnp.float32)   # (B, S, H)
    mu = jnp.mean(x, axis=-1, keepdims=True)
    var = jnp.mean((x - mu) ** 2, axis=-1, keepdims=True)
    return (x - mu) / jnp.sqrt(var + LAYER_NORM_EPS) * gamma.reshape(-1) + beta.reshape(-1)


if __name__ == "__main__":
    # Small, deterministic synthetic config consistent with the module's forward.
    B, S, H, V = 2, 8, 128, 64

    key = jax.random.PRNGKey(0)
    k_emb, k_g, k_b, k_ids = jax.random.split(key, 4)

    # nn.Embedding(vocab, hidden, padding_idx=0): row 0 is zeros.
    word_embeddings = 0.02 * jax.random.normal(k_emb, (V, H), dtype=jnp.float32)
    word_embeddings = word_embeddings.at[0].set(0.0)

    # BertLayerNorm affine params (gamma ~ 1, beta ~ 0), deterministic.
    gamma = 1.0 + 0.1 * jax.random.normal(k_g, (1, H), dtype=jnp.float32)
    beta = 0.05 * jax.random.normal(k_b, (1, H), dtype=jnp.float32)

    input_ids = jax.random.randint(k_ids, (B, S), minval=0, maxval=V, dtype=jnp.int32)
    input_ids = input_ids.at[0, 0].set(0)   # exercise the padding_idx row

    out = bert_embeddings_no_position(input_ids, word_embeddings, gamma, beta)
    out = jax.block_until_ready(out)

    ref = _reference(input_ids, word_embeddings, gamma, beta)
    assert out.shape == (B, S, H)
    assert jnp.allclose(out, ref, atol=1e-5, rtol=1e-5), "mismatch vs reference"

    print("KERNEL_OK")
</pallas_src>

<mosaic_0001>
module attributes {stable_mosaic.version = 11 : i64} {
  func.func @kernel(%arg0: i32, %arg1: memref<16xi32, #tpu.memory_space<smem>>, %arg2: memref<64x128xf32, #tpu.memory_space<any>>, %arg3: memref<1x128xf32, #tpu.memory_space<vmem>>, %arg4: memref<1x128xf32, #tpu.memory_space<vmem>>, %arg5: memref<16x128xf32, #tpu.memory_space<vmem>>, %arg6: memref<16x128xf32, #tpu.memory_space<vmem>>, %arg7: memref<2x!tpu.dma_semaphore, #tpu.memory_space<semaphore_mem>>) attributes {dimension_semantics = [#tpu.dimension_semantics<parallel>], iteration_bounds = array<i64: 1>, scalar_prefetch = 1 : i64, scratch_operands = 2 : i64, tpu.core_type = #tpu.core_type<tc>, window_params = [{}, {pipeline_mode = #tpu.pipeline_mode<synchronous>, transform_indices = @transform_1, window_bounds = array<i64: 1, 128>}, {pipeline_mode = #tpu.pipeline_mode<synchronous>, transform_indices = @transform_2, window_bounds = array<i64: 1, 128>}, {transform_indices = @transform_3, window_bounds = array<i64: 16, 128>}]} {
    %c16_i32 = arith.constant 16 : i32
    %0 = arith.muli %arg0, %c16_i32 : i32
    %1 = tpu.assume_multiple %0, 16 : i32
    %c0 = arith.constant 0 : index
    %c0_0 = arith.constant 0 : index
    %2 = vector.load %arg3[%c0, %c0_0] : memref<1x128xf32, #tpu.memory_space<vmem>>, vector<1x128xf32>
    %c0_1 = arith.constant 0 : index
    %c0_2 = arith.constant 0 : index
    %3 = vector.load %arg4[%c0_1, %c0_2] : memref<1x128xf32, #tpu.memory_space<vmem>>, vector<1x128xf32>
    %c0_i32 = arith.constant 0 : i32
    %4 = arith.addi %1, %c0_i32 : i32
    %c0_i32_3 = arith.constant 0 : i32
    %5 = arith.addi %4, %c0_i32_3 : i32
    %6 = arith.index_cast %5 : i32 to index
    %7 = memref.load %arg1[%6] : memref<16xi32, #tpu.memory_space<smem>>
    %c0_i32_4 = arith.constant 0 : i32
    %c0_i32_5 = arith.constant 0 : i32
    %c0_i32_6 = arith.constant 0 : i32
    %8 = tpu.memref_slice %arg2[%7, %c0_i32_6] : memref<64x128xf32, #tpu.memory_space<any>> -> memref<1x128xf32, #tpu.memory_space<any>>
    %9 = tpu.memref_squeeze %8 : memref<1x128xf32, #tpu.memory_space<any>> -> memref<128xf32, #tpu.memory_space<any>>
    %c0_i32_7 = arith.constant 0 : i32
    %10 = tpu.memref_slice %arg6[%c0_i32_4, %c0_i32_7] : memref<16x128xf32, #tpu.memory_space<vmem>> -> memref<1x128xf32, #tpu.memory_space<vmem>>
    %11 = tpu.memref_squeeze %10 : memref<1x128xf32, #tpu.memory_space<vmem>> -> memref<128xf32, #tpu.memory_space<vmem>>
    %12 = tpu.memref_slice %arg7[%c0_i32_5] : memref<2x!tpu.dma_semaphore, #tpu.memory_space<semaphore_mem>> -> memref<1x!tpu.dma_semaphore, #tpu.memory_space<semaphore_mem>>
    %13 = tpu.memref_squeeze %12 : memref<1x!tpu.dma_semaphore, #tpu.memory_space<semaphore_mem>> -> memref<!tpu.dma_semaphore, #tpu.memory_space<semaphore_mem>>
    tpu.enqueue_dma source(%9 : memref<128xf32, #tpu.memory_space<any>>) target(%11 : memref<128xf32, #tpu.memory_space<vmem>>) target_semaphore(%13 : memref<!tpu.dma_semaphore, #tpu.memory_space<semaphore_mem>>)
    %c0_i32_8 = arith.constant 0 : i32
    %14 = arith.addi %1, %c0_i32_8 : i32
    %c1_i32 = arith.constant 1 : i32
    %15 = arith.addi %14, %c1_i32 : i32
    %16 = arith.index_cast %15 : i32 to index
    %17 = memref.load %arg1[%16] : memref<16xi32, #tpu.memory_space<smem>>
    %c1_i32_9 = arith.constant 1 : i32
    %c0_i32_10 = arith.constant 0 : i32
    %c0_i32_11 = arith.constant 0 : i32
    %18 = tpu.memref_slice %arg2[%17, %c0_i32_11] : memref<64x128xf32, #tpu.memory_space<any>> -> memref<1x128xf32, #tpu.memory_space<any>>
    %19 = tpu.memref_squeeze %18 : memref<1x128xf32, #tpu.memory_space<any>> -> memref<128xf32, #tpu.memory_space<any>>
    %c0_i32_12 = arith.constant 0 : i32
    %20 = tpu.memref_slice %arg6[%c1_i32_9, %c0_i32_12] : memref<16x128xf32, #tpu.memory_space<vmem>> -> memref<1x128xf32, #tpu.memory_space<vmem>>
    %21 = tpu.memref_squeeze %20 : memref<1x128xf32, #tpu.memory_space<vmem>> -> memref<128xf32, #tpu.memory_space<vmem>>
    %22 = tpu.memref_slice %arg7[%c0_i32_10] : memref<2x!tpu.dma_semaphore, #tpu.memory_space<semaphore_mem>> -> memref<1x!tpu.dma_semaphore, #tpu.memory_space<semaphore_mem>>
    %23 = tpu.memref_squeeze %22 : memref<1x!tpu.dma_semaphore, #tpu.memory_space<semaphore_mem>> -> memref<!tpu.dma_semaphore, #tpu.memory_space<semaphore_mem>>
    tpu.enqueue_dma source(%19 : memref<128xf32, #tpu.memory_space<any>>) target(%21 : memref<128xf32, #tpu.memory_space<vmem>>) target_semaphore(%23 : memref<!tpu.dma_semaphore, #tpu.memory_space<semaphore_mem>>)
    %c0_i32_13 = arith.constant 0 : i32
    %24 = arith.addi %1, %c0_i32_13 : i32
    %c2_i32 = arith.constant 2 : i32
    %25 = arith.addi %24, %c2_i32 : i32
    %26 = arith.index_cast %25 : i32 to index
    %27 = memref.load %arg1[%26] : memref<16xi32, #tpu.memory_space<smem>>
    %c2_i32_14 = arith.constant 2 : i32
    %c0_i32_15 = arith.constant 0 : i32
    %c0_i32_16 = arith.constant 0 : i32
    %28 = tpu.memref_slice %arg2[%27, %c0_i32_16] : memref<64x128xf32, #tpu.memory_space<any>> -> memref<1x128xf32, #tpu.memory_space<any>>
    %29 = tpu.memref_squeeze %28 : memref<1x128xf32, #tpu.memory_space<any>> -> memref<128xf32, #tpu.memory_space<any>>
    %c0_i32_17 = arith.constant 0 : i32
    %30 = tpu.memref_slice %arg6[%c2_i32_14, %c0_i32_17] : memref<16x128xf32, #tpu.memory_space<vmem>> -> memref<1x128xf32, #tpu.memory_space<vmem>>
    %31 = tpu.memref_squeeze %30 : memref<1x128xf32, #tpu.memory_space<vmem>> -> memref<128xf32, #tpu.memory_space<vmem>>
    %32 = tpu.memref_slice %arg7[%c0_i32_15] : memref<2x!tpu.dma_semaphore, #tpu.memory_space<semaphore_mem>> -> memref<1x!tpu.dma_semaphore, #tpu.memory_space<semaphore_mem>>
    %33 = tpu.memref_squeeze %32 : memref<1x!tpu.dma_semaphore, #tpu.memory_space<semaphore_mem>> -> memref<!tpu.dma_semaphore, #tpu.memory_space<semaphore_mem>>
    tpu.enqueue_dma source(%29 : memref<128xf32, #tpu.memory_space<any>>) target(%31 : memref<128xf32, #tpu.memory_space<vmem>>) target_semaphore(%33 : memref<!tpu.dma_semaphore, #tpu.memory_space<semaphore_mem>>)
    %c0_i32_18 = arith.constant 0 : i32
    %34 = arith.addi %1, %c0_i32_18 : i32
    %c3_i32 = arith.constant 3 : i32
    %35 = arith.addi %34, %c3_i32 : i32
    %36 = arith.index_cast %35 : i32 to index
    %37 = memref.load %arg1[%36] : memref<16xi32, #tpu.memory_space<smem>>
    %c3_i32_19 = arith.constant 3 : i32
    %c0_i32_20 = arith.constant 0 : i32
    %c0_i32_21 = arith.constant 0 : i32
    %38 = tpu.memref_slice %arg2[%37, %c0_i32_21] : memref<64x128xf32, #tpu.memory_space<any>> -> memref<1x128xf32, #tpu.memory_space<any>>
    %39 = tpu.memref_squeeze %38 : memref<1x128xf32, #tpu.memory_space<any>> -> memref<128xf32, #tpu.memory_space<any>>
    %c0_i32_22 = arith.constant 0 : i32
    %40 = tpu.memref_slice %arg6[%c3_i32_19, %c0_i32_22] : memref<16x128xf32, #tpu.memory_space<vmem>> -> memref<1x128xf32, #tpu.memory_space<vmem>>
    %41 = tpu.memref_squeeze %40 : memref<1x128xf32, #tpu.memory_space<vmem>> -> memref<128xf32, #tpu.memory_space<vmem>>
    %42 = tpu.memref_slice %arg7[%c0_i32_20] : memref<2x!tpu.dma_semaphore, #tpu.memory_space<semaphore_mem>> -> memref<1x!tpu.dma_semaphore, #tpu.memory_space<semaphore_mem>>
    %43 = tpu.memref_squeeze %42 : memref<1x!tpu.dma_semaphore, #tpu.memory_space<semaphore_mem>> -> memref<!tpu.dma_semaphore, #tpu.memory_space<semaphore_mem>>
    tpu.enqueue_dma source(%39 : memref<128xf32, #tpu.memory_space<any>>) target(%41 : memref<128xf32, #tpu.memory_space<vmem>>) target_semaphore(%43 : memref<!tpu.dma_semaphore, #tpu.memory_space<semaphore_mem>>)
    %c0_i32_23 = arith.constant 0 : i32
    %44 = arith.addi %1, %c0_i32_23 : i32
    %c4_i32 = arith.constant 4 : i32
    %45 = arith.addi %44, %c4_i32 : i32
    %46 = arith.index_cast %45 : i32 to index
    %47 = memref.load %arg1[%46] : memref<16xi32, #tpu.memory_space<smem>>
    %c4_i32_24 = arith.constant 4 : i32
    %c0_i32_25 = arith.constant 0 : i32
    %c0_i32_26 = arith.constant 0 : i32
    %48 = tpu.memref_slice %arg2[%47, %c0_i32_26] : memref<64x128xf32, #tpu.memory_space<any>> -> memref<1x128xf32, #tpu.memory_space<any>>
    %49 = tpu.memref_squeeze %48 : memref<1x128xf32, #tpu.memory_space<any>> -> memref<128xf32, #tpu.memory_space<any>>
    %c0_i32_27 = arith.constant 0 : i32
    %50 = tpu.memref_slice %arg6[%c4_i32_24, %c0_i32_27] : memref<16x128xf32, #tpu.memory_space<vmem>> -> memref<1x128xf32, #tpu.memory_space<vmem>>
    %51 = tpu.memref_squeeze %50 : memref<1x128xf32, #tpu.memory_space<vmem>> -> memref<128xf32, #tpu.memory_space<vmem>>
    %52 = tpu.memref_slice %arg7[%c0_i32_25] : memref<2x!tpu.dma_semaphore, #tpu.memory_space<semaphore_mem>> -> memref<1x!tpu.dma_semaphore, #tpu.memory_space<semaphore_mem>>
    %53 = tpu.memref_squeeze %52 : memref<1x!tpu.dma_semaphore, #tpu.memory_space<semaphore_mem>> -> memref<!tpu.dma_semaphore, #tpu.memory_space<semaphore_mem>>
    tpu.enqueue_dma source(%49 : memref<128xf32, #tpu.memory_space<any>>) target(%51 : memref<128xf32, #tpu.memory_space<vmem>>) target_semaphore(%53 : memref<!tpu.dma_semaphore, #tpu.memory_space<semaphore_mem>>)
    %c0_i32_28 = arith.constant 0 : i32
    %54 = arith.addi %1, %c0_i32_28 : i32
    %c5_i32 = arith.constant 5 : i32
    %55 = arith.addi %54, %c5_i32 : i32
    %56 = arith.index_cast %55 : i32 to index
    %57 = memref.load %arg1[%56] : memref<16xi32, #tpu.memory_space<smem>>
    %c5_i32_29 = arith.constant 5 : i32
    %c0_i32_30 = arith.constant 0 : i32
    %c0_i32_31 = arith.constant 0 : i32
    %58 = tpu.memref_slice %arg2[%57, %c0_i32_31] : memref<64x128xf32, #tpu.memory_space<any>> -> memref<1x128xf32, #tpu.memory_space<any>>
    %59 = tpu.memref_squeeze %58 : memref<1x128xf32, #tpu.memory_space<any>> -> memref<128xf32, #tpu.memory_space<any>>
    %c0_i32_32 = arith.constant 0 : i32
    %60 = tpu.memref_slice %arg6[%c5_i32_29, %c0_i32_32] : memref<16x128xf32, #tpu.memory_space<vmem>> -> memref<1x128xf32, #tpu.memory_space<vmem>>
    %61 = tpu.memref_squeeze %60 : memref<1x128xf32, #tpu.memory_space<vmem>> -> memref<128xf32, #tpu.memory_space<vmem>>
    %62 = tpu.memref_slice %arg7[%c0_i32_30] : memref<2x!tpu.dma_semaphore, #tpu.memory_space<semaphore_mem>> -> memref<1x!tpu.dma_semaphore, #tpu.memory_space<semaphore_mem>>
    %63 = tpu.memref_squeeze %62 : memref<1x!tpu.dma_semaphore, #tpu.memory_space<semaphore_mem>> -> memref<!tpu.dma_semaphore, #tpu.memory_space<semaphore_mem>>
    tpu.enqueue_dma source(%59 : memref<128xf32, #tpu.memory_space<any>>) target(%61 : memref<128xf32, #tpu.memory_space<vmem>>) target_semaphore(%63 : memref<!tpu.dma_semaphore, #tpu.memory_space<semaphore_mem>>)
    %c0_i32_33 = arith.constant 0 : i32
    %64 = arith.addi %1, %c0_i32_33 : i32
    %c6_i32 = arith.constant 6 : i32
    %65 = arith.addi %64, %c6_i32 : i32
    %66 = arith.index_cast %65 : i32 to index
    %67 = memref.load %arg1[%66] : memref<16xi32, #tpu.memory_space<smem>>
    %c6_i32_34 = arith.constant 6 : i32
    %c0_i32_35 = arith.constant 0 : i32
    %c0_i32_36 = arith.constant 0 : i32
    %68 = tpu.memref_slice %arg2[%67, %c0_i32_36] : memref<64x128xf32, #tpu.memory_space<any>> -> memref<1x128xf32, #tpu.memory_space<any>>
    %69 = tpu.memref_squeeze %68 : memref<1x128xf32, #tpu.memory_space<any>> -> memref<128xf32, #tpu.memory_space<any>>
    %c0_i32_37 = arith.constant 0 : i32
    %70 = tpu.memref_slice %arg6[%c6_i32_34, %c0_i32_37] : memref<16x128xf32, #tpu.memory_space<vmem>> -> memref<1x128xf32, #tpu.memory_space<vmem>>
    %71 = tpu.memref_squeeze %70 : memref<1x128xf32, #tpu.memory_space<vmem>> -> memref<128xf32, #tpu.memory_space<vmem>>
    %72 = tpu.memref_slice %arg7[%c0_i32_35] : memref<2x!tpu.dma_semaphore, #tpu.memory_space<semaphore_mem>> -> memref<1x!tpu.dma_semaphore, #tpu.memory_space<semaphore_mem>>
    %73 = tpu.memref_squeeze %72 : memref<1x!tpu.dma_semaphore, #tpu.memory_space<semaphore_mem>> -> memref<!tpu.dma_semaphore, #tpu.memory_space<semaphore_mem>>
    tpu.enqueue_dma source(%69 : memref<128xf32, #tpu.memory_space<any>>) target(%71 : memref<128xf32, #tpu.memory_space<vmem>>) target_semaphore(%73 : memref<!tpu.dma_semaphore, #tpu.memory_space<semaphore_mem>>)
    %c0_i32_38 = arith.constant 0 : i32
    %74 = arith.addi %1, %c0_i32_38 : i32
    %c7_i32 = arith.constant 7 : i32
    %75 = arith.addi %74, %c7_i32 : i32
    %76 = arith.index_cast %75 : i32 to index
    %77 = memref.load %arg1[%76] : memref<16xi32, #tpu.memory_space<smem>>
    %c7_i32_39 = arith.constant 7 : i32
    %c0_i32_40 = arith.constant 0 : i32
    %c0_i32_41 = arith.constant 0 : i32
    %78 = tpu.memref_slice %arg2[%77, %c0_i32_41] : memref<64x128xf32, #tpu.memory_space<any>> -> memref<1x128xf32, #tpu.memory_space<any>>
    %79 = tpu.memref_squeeze %78 : memref<1x128xf32, #tpu.memory_space<any>> -> memref<128xf32, #tpu.memory_space<any>>
    %c0_i32_42 = arith.constant 0 : i32
    %80 = tpu.memref_slice %arg6[%c7_i32_39, %c0_i32_42] : memref<16x128xf32, #tpu.memory_space<vmem>> -> memref<1x128xf32, #tpu.memory_space<vmem>>
    %81 = tpu.memref_squeeze %80 : memref<1x128xf32, #tpu.memory_space<vmem>> -> memref<128xf32, #tpu.memory_space<vmem>>
    %82 = tpu.memref_slice %arg7[%c0_i32_40] : memref<2x!tpu.dma_semaphore, #tpu.memory_space<semaphore_mem>> -> memref<1x!tpu.dma_semaphore, #tpu.memory_space<semaphore_mem>>
    %83 = tpu.memref_squeeze %82 : memref<1x!tpu.dma_semaphore, #tpu.memory_space<semaphore_mem>> -> memref<!tpu.dma_semaphore, #tpu.memory_space<semaphore_mem>>
    tpu.enqueue_dma source(%79 : memref<128xf32, #tpu.memory_space<any>>) target(%81 : memref<128xf32, #tpu.memory_space<vmem>>) target_semaphore(%83 : memref<!tpu.dma_semaphore, #tpu.memory_space<semaphore_mem>>)
    %c0_i32_43 = arith.constant 0 : i32
    %84 = arith.addi %1, %c0_i32_43 : i32
    %c8_i32 = arith.constant 8 : i32
    %85 = arith.addi %84, %c8_i32 : i32
    %86 = arith.index_cast %85 : i32 to index
    %87 = memref.load %arg1[%86] : memref<16xi32, #tpu.memory_space<smem>>
    %c8_i32_44 = arith.constant 8 : i32
    %c0_i32_45 = arith.constant 0 : i32
    %c0_i32_46 = arith.constant 0 : i32
    %88 = tpu.memref_slice %arg2[%87, %c0_i32_46] : memref<64x128xf32, #tpu.memory_space<any>> -> memref<1x128xf32, #tpu.memory_space<any>>
    %89 = tpu.memref_squeeze %88 : memref<1x128xf32, #tpu.memory_space<any>> -> memref<128xf32, #tpu.memory_space<any>>
    %c0_i32_47 = arith.constant 0 : i32
    %90 = tpu.memref_slice %arg6[%c8_i32_44, %c0_i32_47] : memref<16x128xf32, #tpu.memory_space<vmem>> -> memref<1x128xf32, #tpu.memory_space<vmem>>
    %91 = tpu.memref_squeeze %90 : memref<1x128xf32, #tpu.memory_space<vmem>> -> memref<128xf32, #tpu.memory_space<vmem>>
    %92 = tpu.memref_slice %arg7[%c0_i32_45] : memref<2x!tpu.dma_semaphore, #tpu.memory_space<semaphore_mem>> -> memref<1x!tpu.dma_semaphore, #tpu.memory_space<semaphore_mem>>
    %93 = tpu.memref_squeeze %92 : memref<1x!tpu.dma_semaphore, #tpu.memory_space<semaphore_mem>> -> memref<!tpu.dma_semaphore, #tpu.memory_space<semaphore_mem>>
    tpu.enqueue_dma source(%89 : memref<128xf32, #tpu.memory_space<any>>) target(%91 : memref<128xf32, #tpu.memory_space<vmem>>) target_semaphore(%93 : memref<!tpu.dma_semaphore, #tpu.memory_space<semaphore_mem>>)
    %c0_i32_48 = arith.constant 0 : i32
    %94 = arith.addi %1, %c0_i32_48 : i32
    %c9_i32 = arith.constant 9 : i32
    %95 = arith.addi %94, %c9_i32 : i32
    %96 = arith.index_cast %95 : i32 to index
    %97 = memref.load %arg1[%96] : memref<16xi32, #tpu.memory_space<smem>>
    %c9_i32_49 = arith.constant 9 : i32
    %c0_i32_50 = arith.constant 0 : i32
    %c0_i32_51 = arith.constant 0 : i32
    %98 = tpu.memref_slice %arg2[%97, %c0_i32_51] : memref<64x128xf32, #tpu.memory_space<any>> -> memref<1x128xf32, #tpu.memory_space<any>>
    %99 = tpu.memref_squeeze %98 : memref<1x128xf32, #tpu.memory_space<any>> -> memref<128xf32, #tpu.memory_space<any>>
    %c0_i32_52 = arith.constant 0 : i32
    %100 = tpu.memref_slice %arg6[%c9_i32_49, %c0_i32_52] : memref<16x128xf32, #tpu.memory_space<vmem>> -> memref<1x128xf32, #tpu.memory_space<vmem>>
    %101 = tpu.memref_squeeze %100 : memref<1x128xf32, #tpu.memory_space<vmem>> -> memref<128xf32, #tpu.memory_space<vmem>>
    %102 = tpu.memref_slice %arg7[%c0_i32_50] : memref<2x!tpu.dma_semaphore, #tpu.memory_space<semaphore_mem>> -> memref<1x!tpu.dma_semaphore, #tpu.memory_space<semaphore_mem>>
    %103 = tpu.memref_squeeze %102 : memref<1x!tpu.dma_semaphore, #tpu.memory_space<semaphore_mem>> -> memref<!tpu.dma_semaphore, #tpu.memory_space<semaphore_mem>>
    tpu.enqueue_dma source(%99 : memref<128xf32, #tpu.memory_space<any>>) target(%101 : memref<128xf32, #tpu.memory_space<vmem>>) target_semaphore(%103 : memref<!tpu.dma_semaphore, #tpu.memory_space<semaphore_mem>>)
    %c0_i32_53 = arith.constant 0 : i32
    %104 = arith.addi %1, %c0_i32_53 : i32
    %c10_i32 = arith.constant 10 : i32
    %105 = arith.addi %104, %c10_i32 : i32
    %106 = arith.index_cast %105 : i32 to index
    %107 = memref.load %arg1[%106] : memref<16xi32, #tpu.memory_space<smem>>
    %c10_i32_54 = arith.constant 10 : i32
    %c0_i32_55 = arith.constant 0 : i32
    %c0_i32_56 = arith.constant 0 : i32
    %108 = tpu.memref_slice %arg2[%107, %c0_i32_56] : memref<64x128xf32, #tpu.memory_space<any>> -> memref<1x128xf32, #tpu.memory_space<any>>
    %109 = tpu.memref_squeeze %108 : memref<1x128xf32, #tpu.memory_space<any>> -> memref<128xf32, #tpu.memory_space<any>>
    %c0_i32_57 = arith.constant 0 : i32
    %110 = tpu.memref_slice %arg6[%c10_i32_54, %c0_i32_57] : memref<16x128xf32, #tpu.memory_space<vmem>> -> memref<1x128xf32, #tpu.memory_space<vmem>>
    %111 = tpu.memref_squeeze %110 : memref<1x128xf32, #tpu.memory_space<vmem>> -> memref<128xf32, #tpu.memory_space<vmem>>
    %112 = tpu.memref_slice %arg7[%c0_i32_55] : memref<2x!tpu.dma_semaphore, #tpu.memory_space<semaphore_mem>> -> memref<1x!tpu.dma_semaphore, #tpu.memory_space<semaphore_mem>>
    %113 = tpu.memref_squeeze %112 : memref<1x!tpu.dma_semaphore, #tpu.memory_space<semaphore_mem>> -> memref<!tpu.dma_semaphore, #tpu.memory_space<semaphore_mem>>
    tpu.enqueue_dma source(%109 : memref<128xf32, #tpu.memory_space<any>>) target(%111 : memref<128xf32, #tpu.memory_space<vmem>>) target_semaphore(%113 : memref<!tpu.dma_semaphore, #tpu.memory_space<semaphore_mem>>)
    %c0_i32_58 = arith.constant 0 : i32
    %114 = arith.addi %1, %c0_i32_58 : i32
    %c11_i32 = arith.constant 11 : i32
    %115 = arith.addi %114, %c11_i32 : i32
    %116 = arith.index_cast %115 : i32 to index
    %117 = memref.load %arg1[%116] : memref<16xi32, #tpu.memory_space<smem>>
    %c11_i32_59 = arith.constant 11 : i32
    %c0_i32_60 = arith.constant 0 : i32
    %c0_i32_61 = arith.constant 0 : i32
    %118 = tpu.memref_slice %arg2[%117, %c0_i32_61] : memref<64x128xf32, #tpu.memory_space<any>> -> memref<1x128xf32, #tpu.memory_space<any>>
    %119 = tpu.memref_squeeze %118 : memref<1x128xf32, #tpu.memory_space<any>> -> memref<128xf32, #tpu.memory_space<any>>
    %c0_i32_62 = arith.constant 0 : i32
    %120 = tpu.memref_slice %arg6[%c11_i32_59, %c0_i32_62] : memref<16x128xf32, #tpu.memory_space<vmem>> -> memref<1x128xf32, #tpu.memory_space<vmem>>
    %121 = tpu.memref_squeeze %120 : memref<1x128xf32, #tpu.memory_space<vmem>> -> memref<128xf32, #tpu.memory_space<vmem>>
    %122 = tpu.memref_slice %arg7[%c0_i32_60] : memref<2x!tpu.dma_semaphore, #tpu.memory_space<semaphore_mem>> -> memref<1x!tpu.dma_semaphore, #tpu.memory_space<semaphore_mem>>
    %123 = tpu.memref_squeeze %122 : memref<1x!tpu.dma_semaphore, #tpu.memory_space<semaphore_mem>> -> memref<!tpu.dma_semaphore, #tpu.memory_space<semaphore_mem>>
    tpu.enqueue_dma source(%119 : memref<128xf32, #tpu.memory_space<any>>) target(%121 : memref<128xf32, #tpu.memory_space<vmem>>) target_semaphore(%123 : memref<!tpu.dma_semaphore, #tpu.memory_space<semaphore_mem>>)
    %c0_i32_63 = arith.constant 0 : i32
    %124 = arith.addi %1, %c0_i32_63 : i32
    %c12_i32 = arith.constant 12 : i32
    %125 = arith.addi %124, %c12_i32 : i32
    %126 = arith.index_cast %125 : i32 to index
    %127 = memref.load %arg1[%126] : memref<16xi32, #tpu.memory_space<smem>>
    %c12_i32_64 = arith.constant 12 : i32
    %c0_i32_65 = arith.constant 0 : i32
    %c0_i32_66 = arith.constant 0 : i32
    %128 = tpu.memref_slice %arg2[%127, %c0_i32_66] : memref<64x128xf32, #tpu.memory_space<any>> -> memref<1x128xf32, #tpu.memory_space<any>>
    %129 = tpu.memref_squeeze %128 : memref<1x128xf32, #tpu.memory_space<any>> -> memref<128xf32, #tpu.memory_space<any>>
    %c0_i32_67 = arith.constant 0 : i32
    %130 = tpu.memref_slice %arg6[%c12_i32_64, %c0_i32_67] : memref<16x128xf32, #tpu.memory_space<vmem>> -> memref<1x128xf32, #tpu.memory_space<vmem>>
    %131 = tpu.memref_squeeze %130 : memref<1x128xf32, #tpu.memory_space<vmem>> -> memref<128xf32, #tpu.memory_space<vmem>>
    %132 = tpu.memref_slice %arg7[%c0_i32_65] : memref<2x!tpu.dma_semaphore, #tpu.memory_space<semaphore_mem>> -> memref<1x!tpu.dma_semaphore, #tpu.memory_space<semaphore_mem>>
    %133 = tpu.memref_squeeze %132 : memref<1x!tpu.dma_semaphore, #tpu.memory_space<semaphore_mem>> -> memref<!tpu.dma_semaphore, #tpu.memory_space<semaphore_mem>>
    tpu.enqueue_dma source(%129 : memref<128xf32, #tpu.memory_space<any>>) target(%131 : memref<128xf32, #tpu.memory_space<vmem>>) target_semaphore(%133 : memref<!tpu.dma_semaphore, #tpu.memory_space<semaphore_mem>>)
    %c0_i32_68 = arith.constant 0 : i32
    %134 = arith.addi %1, %c0_i32_68 : i32
    %c13_i32 = arith.constant 13 : i32
    %135 = arith.addi %134, %c13_i32 : i32
    %136 = arith.index_cast %135 : i32 to index
    %137 = memref.load %arg1[%136] : memref<16xi32, #tpu.memory_space<smem>>
    %c13_i32_69 = arith.constant 13 : i32
    %c0_i32_70 = arith.constant 0 : i32
    %c0_i32_71 = arith.constant 0 : i32
    %138 = tpu.memref_slice %arg2[%137, %c0_i32_71] : memref<64x128xf32, #tpu.memory_space<any>> -> memref<1x128xf32, #tpu.memory_space<any>>
    %139 = tpu.memref_squeeze %138 : memref<1x128xf32, #tpu.memory_space<any>> -> memref<128xf32, #tpu.memory_space<any>>
    %c0_i32_72 = arith.constant 0 : i32
    %140 = tpu.memref_slice %arg6[%c13_i32_69, %c0_i32_72] : memref<16x128xf32, #tpu.memory_space<vmem>> -> memref<1x128xf32, #tpu.memory_space<vmem>>
    %141 = tpu.memref_squeeze %140 : memref<1x128xf32, #tpu.memory_space<vmem>> -> memref<128xf32, #tpu.memory_space<vmem>>
    %142 = tpu.memref_slice %arg7[%c0_i32_70] : memref<2x!tpu.dma_semaphore, #tpu.memory_space<semaphore_mem>> -> memref<1x!tpu.dma_semaphore, #tpu.memory_space<semaphore_mem>>
    %143 = tpu.memref_squeeze %142 : memref<1x!tpu.dma_semaphore, #tpu.memory_space<semaphore_mem>> -> memref<!tpu.dma_semaphore, #tpu.memory_space<semaphore_mem>>
    tpu.enqueue_dma source(%139 : memref<128xf32, #tpu.memory_space<any>>) target(%141 : memref<128xf32, #tpu.memory_space<vmem>>) target_semaphore(%143 : memref<!tpu.dma_semaphore, #tpu.memory_space<semaphore_mem>>)
    %c0_i32_73 = arith.constant 0 : i32
    %144 = arith.addi %1, %c0_i32_73 : i32
    %c14_i32 = arith.constant 14 : i32
    %145 = arith.addi %144, %c14_i32 : i32
    %146 = arith.index_cast %145 : i32 to index
    %147 = memref.load %arg1[%146] : memref<16xi32, #tpu.memory_space<smem>>
    %c14_i32_74 = arith.constant 14 : i32
    %c0_i32_75 = arith.constant 0 : i32
    %c0_i32_76 = arith.constant 0 : i32
    %148 = tpu.memref_slice %arg2[%147, %c0_i32_76] : memref<64x128xf32, #tpu.memory_space<any>> -> memref<1x128xf32, #tpu.memory_space<any>>
    %149 = tpu.memref_squeeze %148 : memref<1x128xf32, #tpu.memory_space<any>> -> memref<128xf32, #tpu.memory_space<any>>
    %c0_i32_77 = arith.constant 0 : i32
    %150 = tpu.memref_slice %arg6[%c14_i32_74, %c0_i32_77] : memref<16x128xf32, #tpu.memory_space<vmem>> -> memref<1x128xf32, #tpu.memory_space<vmem>>
    %151 = tpu.memref_squeeze %150 : memref<1x128xf32, #tpu.memory_space<vmem>> -> memref<128xf32, #tpu.memory_space<vmem>>
    %152 = tpu.memref_slice %arg7[%c0_i32_75] : memref<2x!tpu.dma_semaphore, #tpu.memory_space<semaphore_mem>> -> memref<1x!tpu.dma_semaphore, #tpu.memory_space<semaphore_mem>>
    %153 = tpu.memref_squeeze %152 : memref<1x!tpu.dma_semaphore, #tpu.memory_space<semaphore_mem>> -> memref<!tpu.dma_semaphore, #tpu.memory_space<semaphore_mem>>
    tpu.enqueue_dma source(%149 : memref<128xf32, #tpu.memory_space<any>>) target(%151 : memref<128xf32, #tpu.memory_space<vmem>>) target_semaphore(%153 : memref<!tpu.dma_semaphore, #tpu.memory_space<semaphore_mem>>)
    %c0_i32_78 = arith.constant 0 : i32
    %154 = arith.addi %1, %c0_i32_78 : i32
    %c15_i32 = arith.constant 15 : i32
    %155 = arith.addi %154, %c15_i32 : i32
    %156 = arith.index_cast %155 : i32 to index
    %157 = memref.load %arg1[%156] : memref<16xi32, #tpu.memory_space<smem>>
    %c15_i32_79 = arith.constant 15 : i32
    %c0_i32_80 = arith.constant 0 : i32
    %c0_i32_81 = arith.constant 0 : i32
    %158 = tpu.memref_slice %arg2[%157, %c0_i32_81] : memref<64x128xf32, #tpu.memory_space<any>> -> memref<1x128xf32, #tpu.memory_space<any>>
    %159 = tpu.memref_squeeze %158 : memref<1x128xf32, #tpu.memory_space<any>> -> memref<128xf32, #tpu.memory_space<any>>
    %c0_i32_82 = arith.constant 0 : i32
    %160 = tpu.memref_slice %arg6[%c15_i32_79, %c0_i32_82] : memref<16x128xf32, #tpu.memory_space<vmem>> -> memref<1x128xf32, #tpu.memory_space<vmem>>
    %161 = tpu.memref_squeeze %160 : memref<1x128xf32, #tpu.memory_space<vmem>> -> memref<128xf32, #tpu.memory_space<vmem>>
    %162 = tpu.memref_slice %arg7[%c0_i32_80] : memref<2x!tpu.dma_semaphore, #tpu.memory_space<semaphore_mem>> -> memref<1x!tpu.dma_semaphore, #tpu.memory_space<semaphore_mem>>
    %163 = tpu.memref_squeeze %162 : memref<1x!tpu.dma_semaphore, #tpu.memory_space<semaphore_mem>> -> memref<!tpu.dma_semaphore, #tpu.memory_space<semaphore_mem>>
    tpu.enqueue_dma source(%159 : memref<128xf32, #tpu.memory_space<any>>) target(%161 : memref<128xf32, #tpu.memory_space<vmem>>) target_semaphore(%163 : memref<!tpu.dma_semaphore, #tpu.memory_space<semaphore_mem>>)
    %c0_i32_83 = arith.constant 0 : i32
    %c1_i32_84 = arith.constant 1 : i32
    %164 = arith.muli %c0_i32_83, %c1_i32_84 : i32
    %c0_i32_85 = arith.constant 0 : i32
    %165 = arith.addi %c0_i32_85, %164 : i32
    %c1_i32_86 = arith.constant 1 : i32
    %166 = arith.addi %165, %c1_i32_86 : i32
    %c1_i32_87 = arith.constant 1 : i32
    %167 = arith.cmpi slt, %166, %c1_i32_87 : i32
    %168 = arith.extui %167 : i1 to i32
    %c0_i32_88 = arith.constant 0 : i32
    %169 = arith.cmpi ne, %168, %c0_i32_88 : i32
    scf.if %169 {
      %c1_i32_103 = arith.constant 1 : i32
      %207 = arith.addi %165, %c1_i32_103 : i32
      %c1_i32_104 = arith.constant 1 : i32
      %208 = arith.andi %207, %c1_i32_104 : i32
      %c16_i32_105 = arith.constant 16 : i32
      %209 = arith.muli %207, %c16_i32_105 : i32
      %210 = arith.addi %1, %209 : i32
      %c0_i32_106 = arith.constant 0 : i32
      %211 = arith.addi %210, %c0_i32_106 : i32
      %212 = arith.index_cast %211 : i32 to index
      %213 = memref.load %arg1[%212] : memref<16xi32, #tpu.memory_space<smem>>
      %c0_i32_107 = arith.constant 0 : i32
      %214 = arith.addi %209, %c0_i32_107 : i32
      %c0_i32_108 = arith.constant 0 : i32
      %215 = tpu.memref_slice %arg2[%213, %c0_i32_108] : memref<64x128xf32, #tpu.memory_space<any>> -> memref<1x128xf32, #tpu.memory_space<any>>
      %216 = tpu.memref_squeeze %215 : memref<1x128xf32, #tpu.memory_space<any>> -> memref<128xf32, #tpu.memory_space<any>>
      %c0_i32_109 = arith.constant 0 : i32
      %217 = tpu.memref_slice %arg6[%214, %c0_i32_109] : memref<16x128xf32, #tpu.memory_space<vmem>> -> memref<1x128xf32, #tpu.memory_space<vmem>>
      %218 = tpu.memref_squeeze %217 : memref<1x128xf32, #tpu.memory_space<vmem>> -> memref<128xf32, #tpu.memory_space<vmem>>
      %219 = tpu.memref_slice %arg7[%208] : memref<2x!tpu.dma_semaphore, #tpu.memory_space<semaphore_mem>> -> memref<1x!tpu.dma_semaphore, #tpu.memory_space<semaphore_mem>>
      %220 = tpu.memref_squeeze %219 : memref<1x!tpu.dma_semaphore, #tpu.memory_space<semaphore_mem>> -> memref<!tpu.dma_semaphore, #tpu.memory_space<semaphore_mem>>
      tpu.enqueue_dma source(%216 : memref<128xf32, #tpu.memory_space<any>>) target(%218 : memref<128xf32, #tpu.memory_space<vmem>>) target_semaphore(%220 : memref<!tpu.dma_semaphore, #tpu.memory_space<semaphore_mem>>)
      %221 = arith.addi %1, %209 : i32
      %c1_i32_110 = arith.constant 1 : i32
      %222 = arith.addi %221, %c1_i32_110 : i32
      %223 = arith.index_cast %222 : i32 to index
      %224 = memref.load %arg1[%223] : memref<16xi32, #tpu.memory_space<smem>>
      %c1_i32_111 = arith.constant 1 : i32
      %225 = arith.addi %209, %c1_i32_111 : i32
      %c0_i32_112 = arith.constant 0 : i32
      %226 = tpu.memref_slice %arg2[%224, %c0_i32_112] : memref<64x128xf32, #tpu.memory_space<any>> -> memref<1x128xf32, #tpu.memory_space<any>>
      %227 = tpu.memref_squeeze %226 : memref<1x128xf32, #tpu.memory_space<any>> -> memref<128xf32, #tpu.memory_space<any>>
      %c0_i32_113 = arith.constant 0 : i32
      %228 = tpu.memref_slice %arg6[%225, %c0_i32_113] : memref<16x128xf32, #tpu.memory_space<vmem>> -> memref<1x128xf32, #tpu.memory_space<vmem>>
      %229 = tpu.memref_squeeze %228 : memref<1x128xf32, #tpu.memory_space<vmem>> -> memref<128xf32, #tpu.memory_space<vmem>>
      %230 = tpu.memref_slice %arg7[%208] : memref<2x!tpu.dma_semaphore, #tpu.memory_space<semaphore_mem>> -> memref<1x!tpu.dma_semaphore, #tpu.memory_space<semaphore_mem>>
      %231 = tpu.memref_squeeze %230 : memref<1x!tpu.dma_semaphore, #tpu.memory_space<semaphore_mem>> -> memref<!tpu.dma_semaphore, #tpu.memory_space<semaphore_mem>>
      tpu.enqueue_dma source(%227 : memref<128xf32, #tpu.memory_space<any>>) target(%229 : memref<128xf32, #tpu.memory_space<vmem>>) target_semaphore(%231 : memref<!tpu.dma_semaphore, #tpu.memory_space<semaphore_mem>>)
      %232 = arith.addi %1, %209 : i32
      %c2_i32_114 = arith.constant 2 : i32
      %233 = arith.addi %232, %c2_i32_114 : i32
      %234 = arith.index_cast %233 : i32 to index
      %235 = memref.load %arg1[%234] : memref<16xi32, #tpu.memory_space<smem>>
      %c2_i32_115 = arith.constant 2 : i32
      %236 = arith.addi %209, %c2_i32_115 : i32
      %c0_i32_116 = arith.constant 0 : i32
      %237 = tpu.memref_slice %arg2[%235, %c0_i32_116] : memref<64x128xf32, #tpu.memory_space<any>> -> memref<1x128xf32, #tpu.memory_space<any>>
      %238 = tpu.memref_squeeze %237 : memref<1x128xf32, #tpu.memory_space<any>> -> memref<128xf32, #tpu.memory_space<any>>
      %c0_i32_117 = arith.constant 0 : i32
      %239 = tpu.memref_slice %arg6[%236, %c0_i32_117] : memref<16x128xf32, #tpu.memory_space<vmem>> -> memref<1x128xf32, #tpu.memory_space<vmem>>
      %240 = tpu.memref_squeeze %239 : memref<1x128xf32, #tpu.memory_space<vmem>> -> memref<128xf32, #tpu.memory_space<vmem>>
      %241 = tpu.memref_slice %arg7[%208] : memref<2x!tpu.dma_semaphore, #tpu.memory_space<semaphore_mem>> -> memref<1x!tpu.dma_semaphore, #tpu.memory_space<semaphore_mem>>
      %242 = tpu.memref_squeeze %241 : memref<1x!tpu.dma_semaphore, #tpu.memory_space<semaphore_mem>> -> memref<!tpu.dma_semaphore, #tpu.memory_space<semaphore_mem>>
      tpu.enqueue_dma source(%238 : memref<128xf32, #tpu.memory_space<any>>) target(%240 : memref<128xf32, #tpu.memory_space<vmem>>) target_semaphore(%242 : memref<!tpu.dma_semaphore, #tpu.memory_space<semaphore_mem>>)
      %243 = arith.addi %1, %209 : i32
      %c3_i32_118 = arith.constant 3 : i32
      %244 = arith.addi %243, %c3_i32_118 : i32
      %245 = arith.index_cast %244 : i32 to index
      %246 = memref.load %arg1[%245] : memref<16xi32, #tpu.memory_space<smem>>
      %c3_i32_119 = arith.constant 3 : i32
      %247 = arith.addi %209, %c3_i32_119 : i32
      %c0_i32_120 = arith.constant 0 : i32
      %248 = tpu.memref_slice %arg2[%246, %c0_i32_120] : memref<64x128xf32, #tpu.memory_space<any>> -> memref<1x128xf32, #tpu.memory_space<any>>
      %249 = tpu.memref_squeeze %248 : memref<1x128xf32, #tpu.memory_space<any>> -> memref<128xf32, #tpu.memory_space<any>>
      %c0_i32_121 = arith.constant 0 : i32
      %250 = tpu.memref_slice %arg6[%247, %c0_i32_121] : memref<16x128xf32, #tpu.memory_space<vmem>> -> memref<1x128xf32, #tpu.memory_space<vmem>>
      %251 = tpu.memref_squeeze %250 : memref<1x128xf32, #tpu.memory_space<vmem>> -> memref<128xf32, #tpu.memory_space<vmem>>
      %252 = tpu.memref_slice %arg7[%208] : memref<2x!tpu.dma_semaphore, #tpu.memory_space<semaphore_mem>> -> memref<1x!tpu.dma_semaphore, #tpu.memory_space<semaphore_mem>>
      %253 = tpu.memref_squeeze %252 : memref<1x!tpu.dma_semaphore, #tpu.memory_space<semaphore_mem>> -> memref<!tpu.dma_semaphore, #tpu.memory_space<semaphore_mem>>
      tpu.enqueue_dma source(%249 : memref<128xf32, #tpu.memory_space<any>>) target(%251 : memref<128xf32, #tpu.memory_space<vmem>>) target_semaphore(%253 : memref<!tpu.dma_semaphore, #tpu.memory_space<semaphore_mem>>)
      %254 = arith.addi %1, %209 : i32
      %c4_i32_122 = arith.constant 4 : i32
      %255 = arith.addi %254, %c4_i32_122 : i32
      %256 = arith.index_cast %255 : i32 to index
      %257 = memref.load %arg1[%256] : memref<16xi32, #tpu.memory_space<smem>>
      %c4_i32_123 = arith.constant 4 : i32
      %258 = arith.addi %209, %c4_i32_123 : i32
      %c0_i32_124 = arith.constant 0 : i32
      %259 = tpu.memref_slice %arg2[%257, %c0_i32_124] : memref<64x128xf32, #tpu.memory_space<any>> -> memref<1x128xf32, #tpu.memory_space<any>>
      %260 = tpu.memref_squeeze %259 : memref<1x128xf32, #tpu.memory_space<any>> -> memref<128xf32, #tpu.memory_space<any>>
      %c0_i32_125 = arith.constant 0 : i32
      %261 = tpu.memref_slice %arg6[%258, %c0_i32_125] : memref<16x128xf32, #tpu.memory_space<vmem>> -> memref<1x128xf32, #tpu.memory_space<vmem>>
      %262 = tpu.memref_squeeze %261 : memref<1x128xf32, #tpu.memory_space<vmem>> -> memref<128xf32, #tpu.memory_space<vmem>>
      %263 = tpu.memref_slice %arg7[%208] : memref<2x!tpu.dma_semaphore, #tpu.memory_space<semaphore_mem>> -> memref<1x!tpu.dma_semaphore, #tpu.memory_space<semaphore_mem>>
      %264 = tpu.memref_squeeze %263 : memref<1x!tpu.dma_semaphore, #tpu.memory_space<semaphore_mem>> -> memref<!tpu.dma_semaphore, #tpu.memory_space<semaphore_mem>>
      tpu.enqueue_dma source(%260 : memref<128xf32, #tpu.memory_space<any>>) target(%262 : memref<128xf32, #tpu.memory_space<vmem>>) target_semaphore(%264 : memref<!tpu.dma_semaphore, #tpu.memory_space<semaphore_mem>>)
      %265 = arith.addi %1, %209 : i32
      %c5_i32_126 = arith.constant 5 : i32
      %266 = arith.addi %265, %c5_i32_126 : i32
      %267 = arith.index_cast %266 : i32 to index
      %268 = memref.load %arg1[%267] : memref<16xi32, #tpu.memory_space<smem>>
      %c5_i32_127 = arith.constant 5 : i32
      %269 = arith.addi %209, %c5_i32_127 : i32
      %c0_i32_128 = arith.constant 0 : i32
      %270 = tpu.memref_slice %arg2[%268, %c0_i32_128] : memref<64x128xf32, #tpu.memory_space<any>> -> memref<1x128xf32, #tpu.memory_space<any>>
      %271 = tpu.memref_squeeze %270 : memref<1x128xf32, #tpu.memory_space<any>> -> memref<128xf32, #tpu.memory_space<any>>
      %c0_i32_129 = arith.constant 0 : i32
      %272 = tpu.memref_slice %arg6[%269, %c0_i32_129] : memref<16x128xf32, #tpu.memory_space<vmem>> -> memref<1x128xf32, #tpu.memory_space<vmem>>
      %273 = tpu.memref_squeeze %272 : memref<1x128xf32, #tpu.memory_space<vmem>> -> memref<128xf32, #tpu.memory_space<vmem>>
      %274 = tpu.memref_slice %arg7[%208] : memref<2x!tpu.dma_semaphore, #tpu.memory_space<semaphore_mem>> -> memref<1x!tpu.dma_semaphore, #tpu.memory_space<semaphore_mem>>
      %275 = tpu.memref_squeeze %274 : memref<1x!tpu.dma_semaphore, #tpu.memory_space<semaphore_mem>> -> memref<!tpu.dma_semaphore, #tpu.memory_space<semaphore_mem>>
      tpu.enqueue_dma source(%271 : memref<128xf32, #tpu.memory_space<any>>) target(%273 : memref<128xf32, #tpu.memory_space<vmem>>) target_semaphore(%275 : memref<!tpu.dma_semaphore, #tpu.memory_space<semaphore_mem>>)
      %276 = arith.addi %1, %209 : i32
      %c6_i32_130 = arith.constant 6 : i32
      %277 = arith.addi %276, %c6_i32_130 : i32
      %278 = arith.index_cast %277 : i32 to index
      %279 = memref.load %arg1[%278] : memref<16xi32, #tpu.memory_space<smem>>
      %c6_i32_131 = arith.constant 6 : i32
      %280 = arith.addi %209, %c6_i32_131 : i32
      %c0_i32_132 = arith.constant 0 : i32
      %281 = tpu.memref_slice %arg2[%279, %c0_i32_132] : memref<64x128xf32, #tpu.memory_space<any>> -> memref<1x128xf32, #tpu.memory_space<any>>
      %282 = tpu.memref_squeeze %281 : memref<1x128xf32, #tpu.memory_space<any>> -> memref<128xf32, #tpu.memory_space<any>>
      %c0_i32_133 = arith.constant 0 : i32
      %283 = tpu.memref_slice %arg6[%280, %c0_i32_133] : memref<16x128xf32, #tpu.memory_space<vmem>> -> memref<1x128xf32, #tpu.memory_space<vmem>>
      %284 = tpu.memref_squeeze %283 : memref<1x128xf32, #tpu.memory_space<vmem>> -> memref<128xf32, #tpu.memory_space<vmem>>
      %285 = tpu.memref_slice %arg7[%208] : memref<2x!tpu.dma_semaphore, #tpu.memory_space<semaphore_mem>> -> memref<1x!tpu.dma_semaphore, #tpu.memory_space<semaphore_mem>>
      %286 = tpu.memref_squeeze %285 : memref<1x!tpu.dma_semaphore, #tpu.memory_space<semaphore_mem>> -> memref<!tpu.dma_semaphore, #tpu.memory_space<semaphore_mem>>
      tpu.enqueue_dma source(%282 : memref<128xf32, #tpu.memory_space<any>>) target(%284 : memref<128xf32, #tpu.memory_space<vmem>>) target_semaphore(%286 : memref<!tpu.dma_semaphore, #tpu.memory_space<semaphore_mem>>)
      %287 = arith.addi %1, %209 : i32
      %c7_i32_134 = arith.constant 7 : i32
      %288 = arith.addi %287, %c7_i32_134 : i32
      %289 = arith.index_cast %288 : i32 to index
      %290 = memref.load %arg1[%289] : memref<16xi32, #tpu.memory_space<smem>>
      %c7_i32_135 = arith.constant 7 : i32
      %291 = arith.addi %209, %c7_i32_135 : i32
      %c0_i32_136 = arith.constant 0 : i32
      %292 = tpu.memref_slice %arg2[%290, %c0_i32_136] : memref<64x128xf32, #tpu.memory_space<any>> -> memref<1x128xf32, #tpu.memory_space<any>>
      %293 = tpu.memref_squeeze %292 : memref<1x128xf32, #tpu.memory_space<any>> -> memref<128xf32, #tpu.memory_space<any>>
      %c0_i32_137 = arith.constant 0 : i32
      %294 = tpu.memref_slice %arg6[%291, %c0_i32_137] : memref<16x128xf32, #tpu.memory_space<vmem>> -> memref<1x128xf32, #tpu.memory_space<vmem>>
      %295 = tpu.memref_squeeze %294 : memref<1x128xf32, #tpu.memory_space<vmem>> -> memref<128xf32, #tpu.memory_space<vmem>>
      %296 = tpu.memref_slice %arg7[%208] : memref<2x!tpu.dma_semaphore, #tpu.memory_space<semaphore_mem>> -> memref<1x!tpu.dma_semaphore, #tpu.memory_space<semaphore_mem>>
      %297 = tpu.memref_squeeze %296 : memref<1x!tpu.dma_semaphore, #tpu.memory_space<semaphore_mem>> -> memref<!tpu.dma_semaphore, #tpu.memory_space<semaphore_mem>>
      tpu.enqueue_dma source(%293 : memref<128xf32, #tpu.memory_space<any>>) target(%295 : memref<128xf32, #tpu.memory_space<vmem>>) target_semaphore(%297 : memref<!tpu.dma_semaphore, #tpu.memory_space<semaphore_mem>>)
      %298 = arith.addi %1, %209 : i32
      %c8_i32_138 = arith.constant 8 : i32
      %299 = arith.addi %298, %c8_i32_138 : i32
      %300 = arith.index_cast %299 : i32 to index
      %301 = memref.load %arg1[%300] : memref<16xi32, #tpu.memory_space<smem>>
      %c8_i32_139 = arith.constant 8 : i32
      %302 = arith.addi %209, %c8_i32_139 : i32
      %c0_i32_140 = arith.constant 0 : i32
      %303 = tpu.memref_slice %arg2[%301, %c0_i32_140] : memref<64x128xf32, #tpu.memory_space<any>> -> memref<1x128xf32, #tpu.memory_space<any>>
      %304 = tpu.memref_squeeze %303 : memref<1x128xf32, #tpu.memory_space<any>> -> memref<128xf32, #tpu.memory_space<any>>
      %c0_i32_141 = arith.constant 0 : i32
      %305 = tpu.memref_slice %arg6[%302, %c0_i32_141] : memref<16x128xf32, #tpu.memory_space<vmem>> -> memref<1x128xf32, #tpu.memory_space<vmem>>
      %306 = tpu.memref_squeeze %305 : memref<1x128xf32, #tpu.memory_space<vmem>> -> memref<128xf32, #tpu.memory_space<vmem>>
      %307 = tpu.memref_slice %arg7[%208] : memref<2x!tpu.dma_semaphore, #tpu.memory_space<semaphore_mem>> -> memref<1x!tpu.dma_semaphore, #tpu.memory_space<semaphore_mem>>
      %308 = tpu.memref_squeeze %307 : memref<1x!tpu.dma_semaphore, #tpu.memory_space<semaphore_mem>> -> memref<!tpu.dma_semaphore, #tpu.memory_space<semaphore_mem>>
      tpu.enqueue_dma source(%304 : memref<128xf32, #tpu.memory_space<any>>) target(%306 : memref<128xf32, #tpu.memory_space<vmem>>) target_semaphore(%308 : memref<!tpu.dma_semaphore, #tpu.memory_space<semaphore_mem>>)
      %309 = arith.addi %1, %209 : i32
      %c9_i32_142 = arith.constant 9 : i32
      %310 = arith.addi %309, %c9_i32_142 : i32
      %311 = arith.index_cast %310 : i32 to index
      %312 = memref.load %arg1[%311] : memref<16xi32, #tpu.memory_space<smem>>
      %c9_i32_143 = arith.constant 9 : i32
      %313 = arith.addi %209, %c9_i32_143 : i32
      %c0_i32_144 = arith.constant 0 : i32
      %314 = tpu.memref_slice %arg2[%312, %c0_i32_144] : memref<64x128xf32, #tpu.memory_space<any>> -> memref<1x128xf32, #tpu.memory_space<any>>
      %315 = tpu.memref_squeeze %314 : memref<1x128xf32, #tpu.memory_space<any>> -> memref<128xf32, #tpu.memory_space<any>>
      %c0_i32_145 = arith.constant 0 : i32
      %316 = tpu.memref_slice %arg6[%313, %c0_i32_145] : memref<16x128xf32, #tpu.memory_space<vmem>> -> memref<1x128xf32, #tpu.memory_space<vmem>>
      %317 = tpu.memref_squeeze %316 : memref<1x128xf32, #tpu.memory_space<vmem>> -> memref<128xf32, #tpu.memory_space<vmem>>
      %318 = tpu.memref_slice %arg7[%208] : memref<2x!tpu.dma_semaphore, #tpu.memory_space<semaphore_mem>> -> memref<1x!tpu.dma_semaphore, #tpu.memory_space<semaphore_mem>>
      %319 = tpu.memref_squeeze %318 : memref<1x!tpu.dma_semaphore, #tpu.memory_space<semaphore_mem>> -> memref<!tpu.dma_semaphore, #tpu.memory_space<semaphore_mem>>
      tpu.enqueue_dma source(%315 : memref<128xf32, #tpu.memory_space<any>>) target(%317 : memref<128xf32, #tpu.memory_space<vmem>>) target_semaphore(%319 : memref<!tpu.dma_semaphore, #tpu.memory_space<semaphore_mem>>)
      %320 = arith.addi %1, %209 : i32
      %c10_i32_146 = arith.constant 10 : i32
      %321 = arith.addi %320, %c10_i32_146 : i32
      %322 = arith.index_cast %321 : i32 to index
      %323 = memref.load %arg1[%322] : memref<16xi32, #tpu.memory_space<smem>>
      %c10_i32_147 = arith.constant 10 : i32
      %324 = arith.addi %209, %c10_i32_147 : i32
      %c0_i32_148 = arith.constant 0 : i32
      %325 = tpu.memref_slice %arg2[%323, %c0_i32_148] : memref<64x128xf32, #tpu.memory_space<any>> -> memref<1x128xf32, #tpu.memory_space<any>>
      %326 = tpu.memref_squeeze %325 : memref<1x128xf32, #tpu.memory_space<any>> -> memref<128xf32, #tpu.memory_space<any>>
      %c0_i32_149 = arith.constant 0 : i32
      %327 = tpu.memref_slice %arg6[%324, %c0_i32_149] : memref<16x128xf32, #tpu.memory_space<vmem>> -> memref<1x128xf32, #tpu.memory_space<vmem>>
      %328 = tpu.memref_squeeze %327 : memref<1x128xf32, #tpu.memory_space<vmem>> -> memref<128xf32, #tpu.memory_space<vmem>>
      %329 = tpu.memref_slice %arg7[%208] : memref<2x!tpu.dma_semaphore, #tpu.memory_space<semaphore_mem>> -> memref<1x!tpu.dma_semaphore, #tpu.memory_space<semaphore_mem>>
      %330 = tpu.memref_squeeze %329 : memref<1x!tpu.dma_semaphore, #tpu.memory_space<semaphore_mem>> -> memref<!tpu.dma_semaphore, #tpu.memory_space<semaphore_mem>>
      tpu.enqueue_dma source(%326 : memref<128xf32, #tpu.memory_space<any>>) target(%328 : memref<128xf32, #tpu.memory_space<vmem>>) target_semaphore(%330 : memref<!tpu.dma_semaphore, #tpu.memory_space<semaphore_mem>>)
      %331 = arith.addi %1, %209 : i32
      %c11_i32_150 = arith.constant 11 : i32
      %332 = arith.addi %331, %c11_i32_150 : i32
      %333 = arith.index_cast %332 : i32 to index
      %334 = memref.load %arg1[%333] : memref<16xi32, #tpu.memory_space<smem>>
      %c11_i32_151 = arith.constant 11 : i32
      %335 = arith.addi %209, %c11_i32_151 : i32
      %c0_i32_152 = arith.constant 0 : i32
      %336 = tpu.memref_slice %arg2[%334, %c0_i32_152] : memref<64x128xf32, #tpu.memory_space<any>> -> memref<1x128xf32, #tpu.memory_space<any>>
      %337 = tpu.memref_squeeze %336 : memref<1x128xf32, #tpu.memory_space<any>> -> memref<128xf32, #tpu.memory_space<any>>
      %c0_i32_153 = arith.constant 0 : i32
      %338 = tpu.memref_slice %arg6[%335, %c0_i32_153] : memref<16x128xf32, #tpu.memory_space<vmem>> -> memref<1x128xf32, #tpu.memory_space<vmem>>
      %339 = tpu.memref_squeeze %338 : memref<1x128xf32, #tpu.memory_space<vmem>> -> memref<128xf32, #tpu.memory_space<vmem>>
      %340 = tpu.memref_slice %arg7[%208] : memref<2x!tpu.dma_semaphore, #tpu.memory_space<semaphore_mem>> -> memref<1x!tpu.dma_semaphore, #tpu.memory_space<semaphore_mem>>
      %341 = tpu.memref_squeeze %340 : memref<1x!tpu.dma_semaphore, #tpu.memory_space<semaphore_mem>> -> memref<!tpu.dma_semaphore, #tpu.memory_space<semaphore_mem>>
      tpu.enqueue_dma source(%337 : memref<128xf32, #tpu.memory_space<any>>) target(%339 : memref<128xf32, #tpu.memory_space<vmem>>) target_semaphore(%341 : memref<!tpu.dma_semaphore, #tpu.memory_space<semaphore_mem>>)
      %342 = arith.addi %1, %209 : i32
      %c12_i32_154 = arith.constant 12 : i32
      %343 = arith.addi %342, %c12_i32_154 : i32
      %344 = arith.index_cast %343 : i32 to index
      %345 = memref.load %arg1[%344] : memref<16xi32, #tpu.memory_space<smem>>
      %c12_i32_155 = arith.constant 12 : i32
      %346 = arith.addi %209, %c12_i32_155 : i32
      %c0_i32_156 = arith.constant 0 : i32
      %347 = tpu.memref_slice %arg2[%345, %c0_i32_156] : memref<64x128xf32, #tpu.memory_space<any>> -> memref<1x128xf32, #tpu.memory_space<any>>
      %348 = tpu.memref_squeeze %347 : memref<1x128xf32, #tpu.memory_space<any>> -> memref<128xf32, #tpu.memory_space<any>>
      %c0_i32_157 = arith.constant 0 : i32
      %349 = tpu.memref_slice %arg6[%346, %c0_i32_157] : memref<16x128xf32, #tpu.memory_space<vmem>> -> memref<1x128xf32, #tpu.memory_space<vmem>>
      %350 = tpu.memref_squeeze %349 : memref<1x128xf32, #tpu.memory_space<vmem>> -> memref<128xf32, #tpu.memory_space<vmem>>
      %351 = tpu.memref_slice %arg7[%208] : memref<2x!tpu.dma_semaphore, #tpu.memory_space<semaphore_mem>> -> memref<1x!tpu.dma_semaphore, #tpu.memory_space<semaphore_mem>>
      %352 = tpu.memref_squeeze %351 : memref<1x!tpu.dma_semaphore, #tpu.memory_space<semaphore_mem>> -> memref<!tpu.dma_semaphore, #tpu.memory_space<semaphore_mem>>
      tpu.enqueue_dma source(%348 : memref<128xf32, #tpu.memory_space<any>>) target(%350 : memref<128xf32, #tpu.memory_space<vmem>>) target_semaphore(%352 : memref<!tpu.dma_semaphore, #tpu.memory_space<semaphore_mem>>)
      %353 = arith.addi %1, %209 : i32
      %c13_i32_158 = arith.constant 13 : i32
      %354 = arith.addi %353, %c13_i32_158 : i32
      %355 = arith.index_cast %354 : i32 to index
      %356 = memref.load %arg1[%355] : memref<16xi32, #tpu.memory_space<smem>>
      %c13_i32_159 = arith.constant 13 : i32
      %357 = arith.addi %209, %c13_i32_159 : i32
      %c0_i32_160 = arith.constant 0 : i32
      %358 = tpu.memref_slice %arg2[%356, %c0_i32_160] : memref<64x128xf32, #tpu.memory_space<any>> -> memref<1x128xf32, #tpu.memory_space<any>>
      %359 = tpu.memref_squeeze %358 : memref<1x128xf32, #tpu.memory_space<any>> -> memref<128xf32, #tpu.memory_space<any>>
      %c0_i32_161 = arith.constant 0 : i32
      %360 = tpu.memref_slice %arg6[%357, %c0_i32_161] : memref<16x128xf32, #tpu.memory_space<vmem>> -> memref<1x128xf32, #tpu.memory_space<vmem>>
      %361 = tpu.memref_squeeze %360 : memref<1x128xf32, #tpu.memory_space<vmem>> -> memref<128xf32, #tpu.memory_space<vmem>>
      %362 = tpu.memref_slice %arg7[%208] : memref<2x!tpu.dma_semaphore, #tpu.memory_space<semaphore_mem>> -> memref<1x!tpu.dma_semaphore, #tpu.memory_space<semaphore_mem>>
      %363 = tpu.memref_squeeze %362 : memref<1x!tpu.dma_semaphore, #tpu.memory_space<semaphore_mem>> -> memref<!tpu.dma_semaphore, #tpu.memory_space<semaphore_mem>>
      tpu.enqueue_dma source(%359 : memref<128xf32, #tpu.memory_space<any>>) target(%361 : memref<128xf32, #tpu.memory_space<vmem>>) target_semaphore(%363 : memref<!tpu.dma_semaphore, #tpu.memory_space<semaphore_mem>>)
      %364 = arith.addi %1, %209 : i32
      %c14_i32_162 = arith.constant 14 : i32
      %365 = arith.addi %364, %c14_i32_162 : i32
      %366 = arith.index_cast %365 : i32 to index
      %367 = memref.load %arg1[%366] : memref<16xi32, #tpu.memory_space<smem>>
      %c14_i32_163 = arith.constant 14 : i32
      %368 = arith.addi %209, %c14_i32_163 : i32
      %c0_i32_164 = arith.constant 0 : i32
      %369 = tpu.memref_slice %arg2[%367, %c0_i32_164] : memref<64x128xf32, #tpu.memory_space<any>> -> memref<1x128xf32, #tpu.memory_space<any>>
      %370 = tpu.memref_squeeze %369 : memref<1x128xf32, #tpu.memory_space<any>> -> memref<128xf32, #tpu.memory_space<any>>
      %c0_i32_165 = arith.constant 0 : i32
      %371 = tpu.memref_slice %arg6[%368, %c0_i32_165] : memref<16x128xf32, #tpu.memory_space<vmem>> -> memref<1x128xf32, #tpu.memory_space<vmem>>
      %372 = tpu.memref_squeeze %371 : memref<1x128xf32, #tpu.memory_space<vmem>> -> memref<128xf32, #tpu.memory_space<vmem>>
      %373 = tpu.memref_slice %arg7[%208] : memref<2x!tpu.dma_semaphore, #tpu.memory_space<semaphore_mem>> -> memref<1x!tpu.dma_semaphore, #tpu.memory_space<semaphore_mem>>
      %374 = tpu.memref_squeeze %373 : memref<1x!tpu.dma_semaphore, #tpu.memory_space<semaphore_mem>> -> memref<!tpu.dma_semaphore, #tpu.memory_space<semaphore_mem>>
      tpu.enqueue_dma source(%370 : memref<128xf32, #tpu.memory_space<any>>) target(%372 : memref<128xf32, #tpu.memory_space<vmem>>) target_semaphore(%374 : memref<!tpu.dma_semaphore, #tpu.memory_space<semaphore_mem>>)
      %375 = arith.addi %1, %209 : i32
      %c15_i32_166 = arith.constant 15 : i32
      %376 = arith.addi %375, %c15_i32_166 : i32
      %377 = arith.index_cast %376 : i32 to index
      %378 = memref.load %arg1[%377] : memref<16xi32, #tpu.memory_space<smem>>
      %c15_i32_167 = arith.constant 15 : i32
      %379 = arith.addi %209, %c15_i32_167 : i32
      %c0_i32_168 = arith.constant 0 : i32
      %380 = tpu.memref_slice %arg2[%378, %c0_i32_168] : memref<64x128xf32, #tpu.memory_space<any>> -> memref<1x128xf32, #tpu.memory_space<any>>
      %381 = tpu.memref_squeeze %380 : memref<1x128xf32, #tpu.memory_space<any>> -> memref<128xf32, #tpu.memory_space<any>>
      %c0_i32_169 = arith.constant 0 : i32
      %382 = tpu.memref_slice %arg6[%379, %c0_i32_169] : memref<16x128xf32, #tpu.memory_space<vmem>> -> memref<1x128xf32, #tpu.memory_space<vmem>>
      %383 = tpu.memref_squeeze %382 : memref<1x128xf32, #tpu.memory_space<vmem>> -> memref<128xf32, #tpu.memory_space<vmem>>
      %384 = tpu.memref_slice %arg7[%208] : memref<2x!tpu.dma_semaphore, #tpu.memory_space<semaphore_mem>> -> memref<1x!tpu.dma_semaphore, #tpu.memory_space<semaphore_mem>>
      %385 = tpu.memref_squeeze %384 : memref<1x!tpu.dma_semaphore, #tpu.memory_space<semaphore_mem>> -> memref<!tpu.dma_semaphore, #tpu.memory_space<semaphore_mem>>
      tpu.enqueue_dma source(%381 : memref<128xf32, #tpu.memory_space<any>>) target(%383 : memref<128xf32, #tpu.memory_space<vmem>>) target_semaphore(%385 : memref<!tpu.dma_semaphore, #tpu.memory_space<semaphore_mem>>)
    } else {
    }
    %c1_i32_89 = arith.constant 1 : i32
    %170 = arith.andi %165, %c1_i32_89 : i32
    %c16_i32_90 = arith.constant 16 : i32
    %171 = arith.muli %165, %c16_i32_90 : i32
    %172 = tpu.assume_multiple %171, 16 : i32
    %c0_i32_91 = arith.constant 0 : i32
    %c0_i32_92 = arith.constant 0 : i32
    %173 = tpu.memref_slice %arg2[%c0_i32_91, %c0_i32_92] : memref<64x128xf32, #tpu.memory_space<any>> -> memref<16x128xf32, #tpu.memory_space<any>>
    %c0_i32_93 = arith.constant 0 : i32
    %174 = tpu.memref_slice %arg6[%172, %c0_i32_93] : memref<16x128xf32, #tpu.memory_space<vmem>> -> memref<16x128xf32, #tpu.memory_space<vmem>>
    %175 = tpu.memref_slice %arg7[%170] : memref<2x!tpu.dma_semaphore, #tpu.memory_space<semaphore_mem>> -> memref<1x!tpu.dma_semaphore, #tpu.memory_space<semaphore_mem>>
    %176 = tpu.memref_squeeze %175 : memref<1x!tpu.dma_semaphore, #tpu.memory_space<semaphore_mem>> -> memref<!tpu.dma_semaphore, #tpu.memory_space<semaphore_mem>>
    tpu.wait_dma2 semaphore(%176 : memref<!tpu.dma_semaphore, #tpu.memory_space<semaphore_mem>>) src(%173 : memref<16x128xf32, #tpu.memory_space<any>>) dst(%174 : memref<16x128xf32, #tpu.memory_space<vmem>>)
    %c16_i32_94 = arith.constant 16 : i32
    %177 = arith.muli %165, %c16_i32_94 : i32
    %178 = tpu.assume_multiple %177, 16 : i32
    %179 = arith.index_cast %178 : i32 to index
    %c0_95 = arith.constant 0 : index
    %180 = vector.load %arg6[%179, %c0_95] : memref<16x128xf32, #tpu.memory_space<vmem>>, vector<16x128xf32>
    %cst = arith.constant dense<0.000000e+00> : vector<16xf32>
    %181 = vector.multi_reduction <add>, %180, %cst [1] : vector<16x128xf32> to vector<16xf32>
    %182 = vector.shape_cast %181 : vector<16xf32> to vector<16x1xf32>
    %183 = arith.mulf %180, %180 : vector<16x128xf32>
    %cst_96 = arith.constant dense<0.000000e+00> : vector<16xf32>
    %184 = vector.multi_reduction <add>, %183, %cst_96 [1] : vector<16x128xf32> to vector<16xf32>
    %185 = vector.shape_cast %184 : vector<16xf32> to vector<16x1xf32>
    %cst_97 = arith.constant 7.812500e-03 : f32
    %186 = vector.broadcast %cst_97 : f32 to vector<16x1xf32>
    %187 = arith.mulf %182, %186 : vector<16x1xf32>
    %cst_98 = arith.constant 7.812500e-03 : f32
    %188 = vector.broadcast %cst_98 : f32 to vector<16x1xf32>
    %189 = arith.mulf %185, %188 : vector<16x1xf32>
    %190 = arith.mulf %187, %187 : vector<16x1xf32>
    %191 = arith.subf %189, %190 : vector<16x1xf32>
    %cst_99 = arith.constant 0.000000e+00 : f32
    %192 = vector.broadcast %cst_99 : f32 to vector<16x1xf32>
    %193 = arith.maximumf %191, %192 : vector<16x1xf32>
    %cst_100 = arith.constant 9.99999996E-13 : f32
    %194 = vector.broadcast %cst_100 : f32 to vector<16x1xf32>
    %195 = arith.addf %193, %194 : vector<16x1xf32>
    %196 = math.rsqrt %195 : vector<16x1xf32>
    %197 = vector.broadcast %187 : vector<16x1xf32> to vector<16x128xf32>
    %198 = arith.subf %180, %197 : vector<16x128xf32>
    %199 = vector.broadcast %196 : vector<16x1xf32> to vector<16x128xf32>
    %200 = arith.mulf %198, %199 : vector<16x128xf32>
    %201 = vector.broadcast %2 : vector<1x128xf32> to vector<16x128xf32>
    %202 = arith.mulf %200, %201 : vector<16x128xf32>
    %203 = vector.broadcast %3 : vector<1x128xf32> to vector<16x128xf32>
    %204 = arith.addf %202, %203 : vector<16x128xf32>
    %205 = arith.index_cast %178 : i32 to index
    %c0_101 = arith.constant 0 : index
    %206 = vector.load %arg5[%205, %c0_101] : memref<16x128xf32, #tpu.memory_space<vmem>>, vector<16x128xf32>
    tpu.vector_store %arg5[%205, %c0_101], %204 {strides = array<i32>} : memref<16x128xf32, #tpu.memory_space<vmem>>, vector<16x128xf32>,
    %c1_i32_102 = arith.constant 1 : i32
    return
  }
  func.func @transform_1(%arg0: i32, %arg1: memref<16xi32, #tpu.memory_space<smem>>) -> (i32, i32) {
    %c0_i32 = arith.constant 0 : i32
    %c0_i32_0 = arith.constant 0 : i32
    %c0_i32_1 = arith.constant 0 : i32
    return %c0_i32, %c0_i32_0 : i32, i32
  }
  func.func @transform_2(%arg0: i32, %arg1: memref<16xi32, #tpu.memory_space<smem>>) -> (i32, i32) {
    %c0_i32 = arith.constant 0 : i32
    %c0_i32_0 = arith.constant 0 : i32
    %c0_i32_1 = arith.constant 0 : i32
    return %c0_i32, %c0_i32_0 : i32, i32
  }
  func.func @transform_3(%arg0: i32, %arg1: memref<16xi32, #tpu.memory_space<smem>>) -> (i32, i32) {
    %c0_i32 = arith.constant 0 : i32
    %c0_i32_0 = arith.constant 0 : i32
    return %arg0, %c0_i32 : i32, i32
  }
}

</mosaic_0001>

<llo_original>
// kernel: tpu_custom_call.1
$region0: #{tpu_custom_call.1}
  #allocation0 [shape = 'u32[]', space=smem, size = 0x4, offset = 0x4, fixed_abs, tag = 'smem constant byte address 0x4 - core index']
  #allocation1 [shape = 'u32[72,128]{1,0:T(1,128)}', space=vmem, size = 0x9000, scoped, tag = 'internal scratch']
  #allocation2 [shape = 'f32[16,128]{1,0:T(8,128)}', space=vmem, size = 0x2000, scoped, tag = 'scratch operand']
  #allocation3 [shape = 's32[2]{0}', space=sflag, size = 0x8, scoped, tag = 'scratch operand']
  #allocation4 [shape = 's32[1]{0}', space=sflag, size = 0x4, scoped, tag = 'scoped memory for tpu_custom_call.1']
  #allocation5 [shape = 'u8[512]{0}', space=smem, size = 0x200, scoped, tag = 'prefetched SMEM operand 0']
  #allocation8 [shape = 's32[]', space=sflag, size = 0x4, offset = 0, fixed_abs, tag = 'sflag constant byte address 0x0 - dummy sync flag']
  #allocation9 [shape = 's32[]', space=sflag, size = 0x4, offset = 0, fixed_abs, tag = 'sflag constant byte address 0x0 - dummy sync flag']
  #allocation10 [shape = 'u32[]', space=smem, size = 0x4, offset = 0x44, fixed_abs, tag = 'smem constant byte address 0x44 - assertion arg 0']
  #allocation11 [shape = 'u32[]', space=smem, size = 0x4, offset = 0x48, fixed_abs, tag = 'smem constant byte address 0x48 - assertion arg 1']
  #allocation12 [shape = 's32[]', space=sflag, size = 0x4, offset = 0, fixed_abs, tag = 'sflag constant byte address 0x0 - dummy sync flag']
  #allocation13 [shape = 's32[]', space=sflag, size = 0x4, offset = 0, fixed_abs, tag = 'sflag constant byte address 0x0 - dummy sync flag']
  #allocation14 [shape = 's32[]', space=sflag, size = 0x4, offset = 0, fixed_abs, tag = 'sflag constant byte address 0x0 - dummy sync flag']
  #allocation15 [shape = 's32[]', space=sflag, size = 0x4, offset = 0, fixed_abs, tag = 'sflag constant byte address 0x0 - dummy sync flag']
  #allocation16 [shape = 's32[]', space=sflag, size = 0x4, offset = 0, fixed_abs, tag = 'sflag constant byte address 0x0 - dummy sync flag']
  #allocation17 [shape = 's32[]', space=sflag, size = 0x4, offset = 0, fixed_abs, tag = 'sflag constant byte address 0x0 - dummy sync flag']
  #allocation18 [shape = 's32[]', space=sflag, size = 0x4, offset = 0, fixed_abs, tag = 'sflag constant byte address 0x0 - dummy sync flag']
  #allocation19 [shape = 's32[]', space=sflag, size = 0x4, offset = 0, fixed_abs, tag = 'sflag constant byte address 0x0 - dummy sync flag']
  #allocation20 [shape = 's32[]', space=sflag, size = 0x4, offset = 0, fixed_abs, tag = 'sflag constant byte address 0x0 - dummy sync flag']
  #allocation21 [shape = 's32[]', space=sflag, size = 0x4, offset = 0, fixed_abs, tag = 'sflag constant byte address 0x0 - dummy sync flag']
  #allocation22 [shape = 's32[]', space=sflag, size = 0x4, offset = 0, fixed_abs, tag = 'sflag constant byte address 0x0 - dummy sync flag']
  #allocation23 [shape = 's32[]', space=sflag, size = 0x4, offset = 0, fixed_abs, tag = 'sflag constant byte address 0x0 - dummy sync flag']
  #allocation24 [shape = 's32[]', space=sflag, size = 0x4, offset = 0, fixed_abs, tag = 'sflag constant byte address 0x0 - dummy sync flag']
  #allocation25 [shape = 's32[]', space=sflag, size = 0x4, offset = 0, fixed_abs, tag = 'sflag constant byte address 0x0 - dummy sync flag']
  #allocation26 [shape = 's32[]', space=sflag, size = 0x4, offset = 0, fixed_abs, tag = 'sflag constant byte address 0x0 - dummy sync flag']
  #allocation27 [shape = 's32[]', space=sflag, size = 0x4, offset = 0, fixed_abs, tag = 'sflag constant byte address 0x0 - dummy sync flag']
  #allocation28 [shape = 's32[]', space=sflag, size = 0x4, offset = 0, fixed_abs, tag = 'sflag constant byte address 0x0 - dummy sync flag']
  #allocation29 [shape = 's32[]', space=sflag, size = 0x4, offset = 0, fixed_abs, tag = 'sflag constant byte address 0x0 - dummy sync flag']
  #allocation30 [shape = 's32[]', space=sflag, size = 0x4, offset = 0, fixed_abs, tag = 'sflag constant byte address 0x0 - dummy sync flag']
  #allocation31 [shape = 's32[]', space=sflag, size = 0x4, offset = 0, fixed_abs, tag = 'sflag constant byte address 0x0 - dummy sync flag']
  #allocation32 [shape = 's32[]', space=sflag, size = 0x4, offset = 0, fixed_abs, tag = 'sflag constant byte address 0x0 - dummy sync flag']
  #allocation33 [shape = 's32[]', space=sflag, size = 0x4, offset = 0, fixed_abs, tag = 'sflag constant byte address 0x0 - dummy sync flag']
  #allocation34 [shape = 's32[]', space=sflag, size = 0x4, offset = 0, fixed_abs, tag = 'sflag constant byte address 0x0 - dummy sync flag']
  #allocation35 [shape = 's32[]', space=sflag, size = 0x4, offset = 0, fixed_abs, tag = 'sflag constant byte address 0x0 - dummy sync flag']
  #allocation36 [shape = 's32[]', space=sflag, size = 0x4, offset = 0, fixed_abs, tag = 'sflag constant byte address 0x0 - dummy sync flag']
  #allocation37 [shape = 's32[]', space=sflag, size = 0x4, offset = 0, fixed_abs, tag = 'sflag constant byte address 0x0 - dummy sync flag']
  #allocation38 [shape = 's32[]', space=sflag, size = 0x4, offset = 0, fixed_abs, tag = 'sflag constant byte address 0x0 - dummy sync flag']
  #allocation39 [shape = 's32[]', space=sflag, size = 0x4, offset = 0, fixed_abs, tag = 'sflag constant byte address 0x0 - dummy sync flag']
  #allocation40 [shape = 's32[]', space=sflag, size = 0x4, offset = 0, fixed_abs, tag = 'sflag constant byte address 0x0 - dummy sync flag']
  #allocation41 [shape = 's32[]', space=sflag, size = 0x4, offset = 0, fixed_abs, tag = 'sflag constant byte address 0x0 - dummy sync flag']
  %s0 = inlined_call_operand.hbm [shape: s32[16], index: 0, kind: input, shape index: {}]
  %s1 = inlined_call_operand.hbm [shape: f32[64,128], index: 1, kind: input, shape index: {}]
  %s2 = inlined_call_operand.vmem [shape: f32[1,128], index: 2, kind: input, shape index: {}]
  %s3 = inlined_call_operand.vmem [shape: f32[1,128], index: 3, kind: input, shape index: {}]
  %s4 = inlined_call_operand.hbm [shape: f32[16,128], index: 4, kind: output, shape index: {}]
  %s5 = sld [smem:[#allocation0]]
  $region82: #{tpu_custom_call.1} parent=0
    _
  %s7 = ssub.s32 1, %s5
  %s8 = scalar_select 0, %s7, %s5
  %s10 = sshll.u32 %s0, 4
  %s11 = int_to_ptr.hbm [resolvable:$true] %s10
  %13 = dma.hbm_to_smem %s11, 16, [#allocation5], [#allocation4]
  %15 = dma.done [#allocation4], 16
  %16 = sfence
  $region1: #{tpu_custom_call.1} parent=0
    #allocation6 [shape = 'u8[8192]{0}', space=vmem, size = 0x2000, scoped, tag = 'output window, operand 0, single buffered']
    #allocation7 [shape = 's32[1]{0}', space=sflag, size = 0x4, scoped, tag = 'scoped memory for tpu_custom_call.1']
    %17 = vsyncpa [#allocation7], 0
    // Predicated region
    $region2: #{tpu_custom_call.1} parent=1 // pred_check
      _
    $region3: #{tpu_custom_call.1} parent=1 // pred_check_branch
      %19 = sbr.rel (0) target = $region5
    $region4: #{tpu_custom_call.1} parent=1 // pred_region
      _
    $region5: #{tpu_custom_call.1} parent=1 // pred_fallthru
      _
    // Predicated region
    $region6: #{tpu_custom_call.1} parent=1 // pred_check
      _
    $region7: #{tpu_custom_call.1} parent=1 // pred_check_branch
      %21 = sbr.rel (0) target = $region9
    $region8: #{tpu_custom_call.1} parent=1 // pred_region
      _
    $region9: #{tpu_custom_call.1} parent=1 // pred_fallthru
      _
    %s22 = smul.u32 0, 16
    %v23 = vld [vmem:[%s2] sm:$0x1]
    %v24 = vld [vmem:[%s3] sm:$0x1]
    %s25 = sld [smem:[#allocation5 + %s22]]
    %s26 = scalar_lea.hbm %s1, %s25
    // Predicated region
    $region10: #{tpu_custom_call.1} parent=1 // pred_check
      _
    $region11: #{tpu_custom_call.1} parent=1 // pred_check_branch
      %28 = sbr.rel target = $region13
    $region12: #{tpu_custom_call.1} parent=1 // pred_region
      %29 = sst [smem:[#allocation10]] [#allocation9]
      %30 = sst [smem:[#allocation11]] [#allocation8]
    $region13: #{tpu_custom_call.1} parent=1 // pred_fallthru
      _
    %32 = shalt.err (0)
    %s34 = sshll.u32 %s26, 4
    %s35 = int_to_ptr.hbm [resolvable:$true] %s34
    %s36 = sshll.u32 [#allocation2], 4
    %s37 = int_to_ptr.vmem [resolvable:$true] %s36
    %39 = dma.hbm_to_vmem [thread:$0]  %s35, 16, %s37, [#allocation3]
    %s40 = sadd.s32 %s22, 1
    %s41 = sld [smem:[#allocation5 + %s40]]
    %s42 = scalar_lea.hbm %s1, %s41
    %s43 = scalar_lea.vmem [#allocation2], 1
    // Predicated region
    $region14: #{tpu_custom_call.1} parent=1 // pred_check
      _
    $region15: #{tpu_custom_call.1} parent=1 // pred_check_branch
      %45 = sbr.rel target = $region17
    $region16: #{tpu_custom_call.1} parent=1 // pred_region
      %46 = sst [smem:[#allocation10]] [#allocation13]
      %47 = sst [smem:[#allocation11]] [#allocation12]
    $region17: #{tpu_custom_call.1} parent=1 // pred_fallthru
      _
    %49 = shalt.err (0)
    %s51 = sshll.u32 %s42, 4
    %s52 = int_to_ptr.hbm [resolvable:$true] %s51
    %s53 = sshll.u32 %s43, 4
    %s54 = int_to_ptr.vmem [resolvable:$true] %s53
    %56 = dma.hbm_to_vmem [thread:$0]  %s52, 16, %s54, [#allocation3]
    %s57 = sadd.s32 %s22, 2
    %s58 = sld [smem:[#allocation5 + %s57]]
    %s59 = scalar_lea.hbm %s1, %s58
    %s60 = scalar_lea.vmem [#allocation2], 2
    // Predicated region
    $region18: #{tpu_custom_call.1} parent=1 // pred_check
      _
    $region19: #{tpu_custom_call.1} parent=1 // pred_check_branch
      %62 = sbr.rel target = $region21
    $region20: #{tpu_custom_call.1} parent=1 // pred_region
      %63 = sst [smem:[#allocation10]] [#allocation15]
      %64 = sst [smem:[#allocation11]] [#allocation14]
    $region21: #{tpu_custom_call.1} parent=1 // pred_fallthru
      _
    %66 = shalt.err (0)
    %s68 = sshll.u32 %s59, 4
    %s69 = int_to_ptr.hbm [resolvable:$true] %s68
    %s70 = sshll.u32 %s60, 4
    %s71 = int_to_ptr.vmem [resolvable:$true] %s70
    %73 = dma.hbm_to_vmem [thread:$0]  %s69, 16, %s71, [#allocation3]
    %s74 = sadd.s32 %s22, 3
    %s75 = sld [smem:[#allocation5 + %s74]]
    %s76 = scalar_lea.hbm %s1, %s75
    %s77 = scalar_lea.vmem [#allocation2], 3
    // Predicated region
    $region22: #{tpu_custom_call.1} parent=1 // pred_check
      _
    $region23: #{tpu_custom_call.1} parent=1 // pred_check_branch
      %79 = sbr.rel target = $region25
    $region24: #{tpu_custom_call.1} parent=1 // pred_region
      %80 = sst [smem:[#allocation10]] [#allocation17]
      %81 = sst [smem:[#allocation11]] [#allocation16]
    $region25: #{tpu_custom_call.1} parent=1 // pred_fallthru
      _
    %83 = shalt.err (0)
    %s85 = sshll.u32 %s76, 4
    %s86 = int_to_ptr.hbm [resolvable:$true] %s85
    %s87 = sshll.u32 %s77, 4
    %s88 = int_to_ptr.vmem [resolvable:$true] %s87
    %90 = dma.hbm_to_vmem [thread:$0]  %s86, 16, %s88, [#allocation3]
    %s91 = sadd.s32 %s22, 4
    %s92 = sld [smem:[#allocation5 + %s91]]
    %s93 = scalar_lea.hbm %s1, %s92
    %s94 = scalar_lea.vmem [#allocation2], 4
    // Predicated region
    $region26: #{tpu_custom_call.1} parent=1 // pred_check
      _
    $region27: #{tpu_custom_call.1} parent=1 // pred_check_branch
      %96 = sbr.rel target = $region29
    $region28: #{tpu_custom_call.1} parent=1 // pred_region
      %97 = sst [smem:[#allocation10]] [#allocation19]
      %98 = sst [smem:[#allocation11]] [#allocation18]
    $region29: #{tpu_custom_call.1} parent=1 // pred_fallthru
      _
    %100 = shalt.err (0)
    %s102 = sshll.u32 %s93, 4
    %s103 = int_to_ptr.hbm [resolvable:$true] %s102
    %s104 = sshll.u32 %s94, 4
    %s105 = int_to_ptr.vmem [resolvable:$true] %s104
    %107 = dma.hbm_to_vmem [thread:$0]  %s103, 16, %s105, [#allocation3]
    %s108 = sadd.s32 %s22, 5
    %s109 = sld [smem:[#allocation5 + %s108]]
    %s110 = scalar_lea.hbm %s1, %s109
    %s111 = scalar_lea.vmem [#allocation2], 5
    // Predicated region
    $region30: #{tpu_custom_call.1} parent=1 // pred_check
      _
    $region31: #{tpu_custom_call.1} parent=1 // pred_check_branch
      %113 = sbr.rel target = $region33
    $region32: #{tpu_custom_call.1} parent=1 // pred_region
      %114 = sst [smem:[#allocation10]] [#allocation21]
      %115 = sst [smem:[#allocation11]] [#allocation20]
    $region33: #{tpu_custom_call.1} parent=1 // pred_fallthru
      _
    %117 = shalt.err (0)
    %s119 = sshll.u32 %s110, 4
    %s120 = int_to_ptr.hbm [resolvable:$true] %s119
    %s121 = sshll.u32 %s111, 4
    %s122 = int_to_ptr.vmem [resolvable:$true] %s121
    %124 = dma.hbm_to_vmem [thread:$0]  %s120, 16, %s122, [#allocation3]
    %s125 = sadd.s32 %s22, 6
    %s126 = sld [smem:[#allocation5 + %s125]]
    %s127 = scalar_lea.hbm %s1, %s126
    %s128 = scalar_lea.vmem [#allocation2], 6
    // Predicated region
    $region34: #{tpu_custom_call.1} parent=1 // pred_check
      _
    $region35: #{tpu_custom_call.1} parent=1 // pred_check_branch
      %130 = sbr.rel target = $region37
    $region36: #{tpu_custom_call.1} parent=1 // pred_region
      %131 = sst [smem:[#allocation10]] [#allocation23]
      %132 = sst [smem:[#allocation11]] [#allocation22]
    $region37: #{tpu_custom_call.1} parent=1 // pred_fallthru
      _
    %134 = shalt.err (0)
    %s136 = sshll.u32 %s127, 4
    %s137 = int_to_ptr.hbm [resolvable:$true] %s136
    %s138 = sshll.u32 %s128, 4
    %s139 = int_to_ptr.vmem [resolvable:$true] %s138
    %141 = dma.hbm_to_vmem [thread:$0]  %s137, 16, %s139, [#allocation3]
    %s142 = sadd.s32 %s22, 7
    %s143 = sld [smem:[#allocation5 + %s142]]
    %s144 = scalar_lea.hbm %s1, %s143
    %s145 = scalar_lea.vmem [#allocation2], 7
    // Predicated region
    $region38: #{tpu_custom_call.1} parent=1 // pred_check
      _
    $region39: #{tpu_custom_call.1} parent=1 // pred_check_branch
      %147 = sbr.rel target = $region41
    $region40: #{tpu_custom_call.1} parent=1 // pred_region
      %148 = sst [smem:[#allocation10]] [#allocation25]
      %149 = sst [smem:[#allocation11]] [#allocation24]
    $region41: #{tpu_custom_call.1} parent=1 // pred_fallthru
      _
    %151 = shalt.err (0)
    %s153 = sshll.u32 %s144, 4
    %s154 = int_to_ptr.hbm [resolvable:$true] %s153
    %s155 = sshll.u32 %s145, 4
    %s156 = int_to_ptr.vmem [resolvable:$true] %s155
    %158 = dma.hbm_to_vmem [thread:$0]  %s154, 16, %s156, [#allocation3]
    %s159 = sadd.s32 %s22, 8
    %s160 = sld [smem:[#allocation5 + %s159]]
    %s161 = scalar_lea.hbm %s1, %s160
    %s162 = scalar_lea.vmem [#allocation2], 8
    // Predicated region
    $region42: #{tpu_custom_call.1} parent=1 // pred_check
      _
    $region43: #{tpu_custom_call.1} parent=1 // pred_check_branch
      %164 = sbr.rel target = $region45
    $region44: #{tpu_custom_call.1} parent=1 // pred_region
      %165 = sst [smem:[#allocation10]] [#allocation27]
      %166 = sst [smem:[#allocation11]] [#allocation26]
    $region45: #{tpu_custom_call.1} parent=1 // pred_fallthru
      _
    %168 = shalt.err (0)
    %s170 = sshll.u32 %s161, 4
    %s171 = int_to_ptr.hbm [resolvable:$true] %s170
    %s172 = sshll.u32 %s162, 4
    %s173 = int_to_ptr.vmem [resolvable:$true] %s172
    %175 = dma.hbm_to_vmem [thread:$0]  %s171, 16, %s173, [#allocation3]
    %s176 = sadd.s32 %s22, 9
    %s177 = sld [smem:[#allocation5 + %s176]]
    %s178 = scalar_lea.hbm %s1, %s177
    %s179 = scalar_lea.vmem [#allocation2], 9
    // Predicated region
    $region46: #{tpu_custom_call.1} parent=1 // pred_check
      _
    $region47: #{tpu_custom_call.1} parent=1 // pred_check_branch
      %181 = sbr.rel target = $region49
    $region48: #{tpu_custom_call.1} parent=1 // pred_region
      %182 = sst [smem:[#allocation10]] [#allocation29]
      %183 = sst [smem:[#allocation11]] [#allocation28]
    $region49: #{tpu_custom_call.1} parent=1 // pred_fallthru
      _
    %185 = shalt.err (0)
    %s187 = sshll.u32 %s178, 4
    %s188 = int_to_ptr.hbm [resolvable:$true] %s187
    %s189 = sshll.u32 %s179, 4
    %s190 = int_to_ptr.vmem [resolvable:$true] %s189
    %192 = dma.hbm_to_vmem [thread:$0]  %s188, 16, %s190, [#allocation3]
    %s193 = sadd.s32 %s22, 10
    %s194 = sld [smem:[#allocation5 + %s193]]
    %s195 = scalar_lea.hbm %s1, %s194
    %s196 = scalar_lea.vmem [#allocation2], 10
    // Predicated region
    $region50: #{tpu_custom_call.1} parent=1 // pred_check
      _
    $region51: #{tpu_custom_call.1} parent=1 // pred_check_branch
      %198 = sbr.rel target = $region53
    $region52: #{tpu_custom_call.1} parent=1 // pred_region
      %199 = sst [smem:[#allocation10]] [#allocation31]
      %200 = sst [smem:[#allocation11]] [#allocation30]
    $region53: #{tpu_custom_call.1} parent=1 // pred_fallthru
      _
    %202 = shalt.err (0)
    %s204 = sshll.u32 %s195, 4
    %s205 = int_to_ptr.hbm [resolvable:$true] %s204
    %s206 = sshll.u32 %s196, 4
    %s207 = int_to_ptr.vmem [resolvable:$true] %s206
    %209 = dma.hbm_to_vmem [thread:$0]  %s205, 16, %s207, [#allocation3]
    %s210 = sadd.s32 %s22, 11
    %s211 = sld [smem:[#allocation5 + %s210]]
    %s212 = scalar_lea.hbm %s1, %s211
    %s213 = scalar_lea.vmem [#allocation2], 11
    // Predicated region
    $region54: #{tpu_custom_call.1} parent=1 // pred_check
      _
    $region55: #{tpu_custom_call.1} parent=1 // pred_check_branch
      %215 = sbr.rel target = $region57
    $region56: #{tpu_custom_call.1} parent=1 // pred_region
      %216 = sst [smem:[#allocation10]] [#allocation33]
      %217 = sst [smem:[#allocation11]] [#allocation32]
    $region57: #{tpu_custom_call.1} parent=1 // pred_fallthru
      _
    %219 = shalt.err (0)
    %s221 = sshll.u32 %s212, 4
    %s222 = int_to_ptr.hbm [resolvable:$true] %s221
    %s223 = sshll.u32 %s213, 4
    %s224 = int_to_ptr.vmem [resolvable:$true] %s223
    %226 = dma.hbm_to_vmem [thread:$0]  %s222, 16, %s224, [#allocation3]
    %s227 = sadd.s32 %s22, 12
    %s228 = sld [smem:[#allocation5 + %s227]]
    %s229 = scalar_lea.hbm %s1, %s228
    %s230 = scalar_lea.vmem [#allocation2], 12
    // Predicated region
    $region58: #{tpu_custom_call.1} parent=1 // pred_check
      _
    $region59: #{tpu_custom_call.1} parent=1 // pred_check_branch
      %232 = sbr.rel target = $region61
    $region60: #{tpu_custom_call.1} parent=1 // pred_region
      %233 = sst [smem:[#allocation10]] [#allocation35]
      %234 = sst [smem:[#allocation11]] [#allocation34]
    $region61: #{tpu_custom_call.1} parent=1 // pred_fallthru
      _
    %236 = shalt.err (0)
    %s238 = sshll.u32 %s229, 4
    %s239 = int_to_ptr.hbm [resolvable:$true] %s238
    %s240 = sshll.u32 %s230, 4
    %s241 = int_to_ptr.vmem [resolvable:$true] %s240
    %243 = dma.hbm_to_vmem [thread:$0]  %s239, 16, %s241, [#allocation3]
    %s244 = sadd.s32 %s22, 13
    %s245 = sld [smem:[#allocation5 + %s244]]
    %s246 = scalar_lea.hbm %s1, %s245
    %s247 = scalar_lea.vmem [#allocation2], 13
    // Predicated region
    $region62: #{tpu_custom_call.1} parent=1 // pred_check
      _
    $region63: #{tpu_custom_call.1} parent=1 // pred_check_branch
      %249 = sbr.rel target = $region65
    $region64: #{tpu_custom_call.1} parent=1 // pred_region
      %250 = sst [smem:[#allocation10]] [#allocation37]
      %251 = sst [smem:[#allocation11]] [#allocation36]
    $region65: #{tpu_custom_call.1} parent=1 // pred_fallthru
      _
    %253 = shalt.err (0)
    %s255 = sshll.u32 %s246, 4
    %s256 = int_to_ptr.hbm [resolvable:$true] %s255
    %s257 = sshll.u32 %s247, 4
    %s258 = int_to_ptr.vmem [resolvable:$true] %s257
    %260 = dma.hbm_to_vmem [thread:$0]  %s256, 16, %s258, [#allocation3]
    %s261 = sadd.s32 %s22, 14
    %s262 = sld [smem:[#allocation5 + %s261]]
    %s263 = scalar_lea.hbm %s1, %s262
    %s264 = scalar_lea.vmem [#allocation2], 14
    // Predicated region
    $region66: #{tpu_custom_call.1} parent=1 // pred_check
      _
    $region67: #{tpu_custom_call.1} parent=1 // pred_check_branch
      %266 = sbr.rel target = $region69
    $region68: #{tpu_custom_call.1} parent=1 // pred_region
      %267 = sst [smem:[#allocation10]] [#allocation39]
      %268 = sst [smem:[#allocation11]] [#allocation38]
    $region69: #{tpu_custom_call.1} parent=1 // pred_fallthru
      _
    %270 = shalt.err (0)
    %s272 = sshll.u32 %s263, 4
    %s273 = int_to_ptr.hbm [resolvable:$true] %s272
    %s274 = sshll.u32 %s264, 4
    %s275 = int_to_ptr.vmem [resolvable:$true] %s274
    %277 = dma.hbm_to_vmem [thread:$0]  %s273, 16, %s275, [#allocation3]
    %s278 = sadd.s32 %s22, 15
    %s279 = sld [smem:[#allocation5 + %s278]]
    %s280 = scalar_lea.hbm %s1, %s279
    %s281 = scalar_lea.vmem [#allocation2], 15
    // Predicated region
    $region70: #{tpu_custom_call.1} parent=1 // pred_check
      _
    $region71: #{tpu_custom_call.1} parent=1 // pred_check_branch
      %283 = sbr.rel target = $region73
    $region72: #{tpu_custom_call.1} parent=1 // pred_region
      %284 = sst [smem:[#allocation10]] [#allocation41]
      %285 = sst [smem:[#allocation11]] [#allocation40]
    $region73: #{tpu_custom_call.1} parent=1 // pred_fallthru
      _
    %287 = shalt.err (0)
    %s289 = sshll.u32 %s280, 4
    %s290 = int_to_ptr.hbm [resolvable:$true] %s289
    %s291 = sshll.u32 %s281, 4
    %s292 = int_to_ptr.vmem [resolvable:$true] %s291
    %294 = dma.hbm_to_vmem [thread:$0]  %s290, 16, %s292, [#allocation3]
    %s295 = smul.u32 16, 1
    %s296 = sshll.u32 %s295, 4
    %297 = dma.done [#allocation3], %s296
    %v298 = vld [vmem:[#allocation2] sm:$0xff]
    %v299 = vld [vmem:[#allocation2 + $0x8] sm:$0xff]
    %300 = vadd.xlane.f32.xlu0 %v298
    %v301 = vpop.xlane.xlu0 %300
    %302 = vadd.xlane.f32.xlu0 %v299
    %v303 = vpop.xlane.xlu0 %302
    %v304 = vmul.f32 %v298, %v298
    %v305 = vmul.f32 %v299, %v299
    %306 = vadd.xlane.f32.xlu0 %v304
    %v307 = vpop.xlane.xlu0 %306
    %308 = vadd.xlane.f32.xlu0 %v305
    %v309 = vpop.xlane.xlu0 %308
    %v310 = vmul.f32 %v301, 0.0078125
    %v311 = vmul.f32 %v303, 0.0078125
    %v312 = vmul.f32 %v307, 0.0078125
    %v313 = vmul.f32 %v309, 0.0078125
    %v314 = vmul.f32 %v310, %v310
    %v315 = vmul.f32 %v311, %v311
    %v316 = vsub.f32 %v312, %v314
    %v317 = vsub.f32 %v313, %v315
    %v318 = vmax.f32 %v316, 0.0
    %v319 = vmax.f32 %v317, 0.0
    %v320 = vadd.f32 %v318, 1e-12
    %v321 = vadd.f32 %v319, 1e-12
    %v322 = vrsqrt.pop %v320
    %v323 = vmul.f32 %v322, %v320
    %v324 = vmul.f32 %v323, %v322
    %v325 = vmul.f32 0.5, %v324
    %v326 = vsub.f32 1.5, %v325
    %v327 = vmul.f32 %v322, %v326
    %vm328 = vweird.f32 %v320
    %vm329 = vweird.f32 %v322
    %vm330 = vmor %vm328, %vm329
    %v331 = vsel %vm330, %v322, %v327
    %v332 = vrsqrt.pop %v321
    %v333 = vmul.f32 %v332, %v321
    %v334 = vmul.f32 %v333, %v332
    %v335 = vmul.f32 0.5, %v334
    %v336 = vsub.f32 1.5, %v335
    %v337 = vmul.f32 %v332, %v336
    %vm338 = vweird.f32 %v321
    %vm339 = vweird.f32 %v332
    %vm340 = vmor %vm338, %vm339
    %v341 = vsel %vm340, %v332, %v337
    %v342 = vsub.f32 %v298, %v310
    %v343 = vsub.f32 %v299, %v311
    %v344 = vmul.f32 %v342, %v331
    %v345 = vmul.f32 %v343, %v341
    %v347 = vperm.slane %v23, 0
    %v349 = vmul.f32 %v344, %v347
    %v350 = vmul.f32 %v345, %v347
    %v352 = vperm.slane %v24, 0
    %v354 = vadd.f32 %v349, %v352
    %v355 = vadd.f32 %v350, %v352
    %356 = vst [vmem:[#allocation6] sm:$0xff] %v354
    %357 = vst [vmem:[#allocation6 + $0x8] sm:$0xff] %v355
    // Predicated region
    $region74: #{tpu_custom_call.1} parent=1 // pred_check
      _
    $region75: #{tpu_custom_call.1} parent=1 // pred_check_branch
      %359 = sbr.rel (0) target = $region77
    $region76: #{tpu_custom_call.1} parent=1 // pred_region
      %361 = vsyncadd [#allocation7], 0
      %s362 = sshll.u32 [#allocation6], 4
      %s363 = int_to_ptr.vmem [resolvable:$true] %s362
      %s364 = sshll.u32 %s4, 4
      %s365 = int_to_ptr.hbm [resolvable:$true] %s364
      %370 = dma.vmem_to_hbm [thread:$0]  %s363, 256, %s365, [#allocation7], 128, 128, 8
    $region77: #{tpu_custom_call.1} parent=1 // pred_fallthru
      _
    // Predicated region
    $region78: #{tpu_custom_call.1} parent=1 // pred_check
      _
    $region79: #{tpu_custom_call.1} parent=1 // pred_check_branch
      %372 = sbr.rel (0) target = $region81
    $region80: #{tpu_custom_call.1} parent=1 // pred_region
      %374 = dma.done [#allocation7], 256
    $region81: #{tpu_custom_call.1} parent=1 // pred_fallthru
      _
    %375 = vsyncpa [#allocation7], 1
  %376 = vsyncmov [#allocation3]
  %s377 = vpop.sfrf %376
  %p378 = scmp.eq.s32.totalorder %s377, 0
  %p379 = pneg %p378
  %381 = shalt.err (%p379)
  %s382 = scalar_lea.sflag [#allocation3], 1
  %383 = vsyncmov %s382
  %s384 = vpop.sfrf %383
  %p385 = scmp.eq.s32.totalorder %s384, 0
  %p386 = pneg %p385
  %388 = shalt.err (%p386)

</llo_original>
